<compile_context>
chip_gen: v5e
topology: v5e:2x2
jax: 0.10.0
libtpu: 0.0.40
codegen_flags: <defaults>
</compile_context>

<pallas_src>
import functools

import jax
import jax.numpy as jnp
from jax.experimental import pallas as pl
from jax.experimental.pallas import tpu as pltpu

POOL = 3  # kernel_size == stride for nn.MaxPool2d(kernel_size=3)


def _round_up(a: int, b: int) -> int:
    return -(-a // b) * b


def _sublane(itemsize: int) -> int:
    return {4: 8, 2: 16, 1: 32}.get(itemsize, 8)


def _vmem_budget():
    """(vmem_limit_bytes, double-buffered working-set budget) per generation."""
    limit = 32 << 20  # safe default on v5e / v6e / v7x
    try:
        cap = int(pltpu.get_tpu_info().vmem_capacity_bytes)
        if cap > 0:
            limit = min(max(cap // 2, 32 << 20), 64 << 20)
    except Exception:
        pass
    return limit, (limit * 3) // 4


def _pick_blocks(ho, wo, w, ncs, ncl, itemsize, budget, k=POOL):
    """Pick (output rows per block, channel-groups per block) from padded tile bytes."""
    sub = _sublane(itemsize)
    lane_p = _round_up(ncl, 128)

    def footprint(bho, bncs):
        sub_p = _round_up(bncs, sub)
        in_b = (k * bho) * w * sub_p * lane_p * itemsize
        out_b = bho * wo * sub_p * lane_p * itemsize
        # 2x double-buffered pipeline blocks + ~1.5 input blocks of temporaries.
        return 2 * (in_b + out_b) + (3 * in_b) // 2

    if ncs <= 8:
        bncs = ncs  # equal to the full dim -> always a legal block
    else:
        # Aim for >= 2 steps on the "parallel" channel axis (v7x megacore), then
        # shrink in sublane-sized steps until a single-row block fits the budget.
        bncs = _round_up(-(-ncs // 2), 8)
        while bncs > 8 and footprint(1, bncs) > budget:
            bncs -= 8

    per = footprint(1, bncs)
    bho = max(1, min(ho, budget // per))
    return bho, bncs


def _maxpool_kernel(mask_ref, x_ref, o_ref, *, k, ragged_w, pad_val):
    # mask_ref: (BH, 1, 1, 1) row-validity (1.0 valid / 0.0 outside real input)
    # x_ref   : (BH, W, BCS, CL)   BH = k * BHO, channels on (sublane, lane)
    # o_ref   : (BHO, WO, BCS, CL)
    bho, wo, bcs, cl = o_ref.shape
    bh, w, _, _ = x_ref.shape

    x = x_ref[...]
    pad = jnp.asarray(pad_val, dtype=x.dtype)
    # Mask rows beyond the real input height: covers both the ceil-mode tail rows
    # of the last window and the garbage rows DMA'd for a ragged last H block.
    x = jnp.where(mask_ref[...] > 0.5, x, pad)

    # --- max over the k rows of each window: leading-dim split (free) + VPU ----
    x5 = x.reshape(bho, k, w, bcs, cl)
    r = x5[:, 0]
    for t in range(1, k):
        r = jnp.maximum(r, x5[:, t])          # (BHO, W, BCS, CL)

    # --- max over the k cols of each window: leading-dim split (free) + VPU ----
    wm = wo - 1 if ragged_w else wo           # number of full-width windows
    pieces = []
    if wm > 0:
        m5 = r[:, : k * wm].reshape(bho, wm, k, bcs, cl)
        m = m5[:, :, 0]
        for t in range(1, k):
            m = jnp.maximum(m, m5[:, :, t])
        pieces.append(m)                      # (BHO, WM, BCS, CL)
    if ragged_w:
        tail = r[:, k * wm:]                  # (BHO, 1..k-1, BCS, CL)
        tmax = tail[:, 0]
        for t in range(1, tail.shape[1]):
            tmax = jnp.maximum(tmax, tail[:, t])
        pieces.append(tmax[:, None])          # (BHO, 1, BCS, CL)

    out = pieces[0] if len(pieces) == 1 else jnp.concatenate(pieces, axis=1)
    o_ref[...] = out.astype(o_ref.dtype)      # one full, lane-dense block store


def maxpool2d_ceil(x_nchw: jax.Array, k: int = POOL) -> jax.Array:
    """nn.MaxPool2d(kernel_size=k, ceil_mode=True) forward (stride=k, pad=0)."""
    n, c, h, w = x_nchw.shape
    dtype = x_nchw.dtype
    ho, wo = -(-h // k), -(-w // k)
    nc = n * c

    if jnp.issubdtype(dtype, jnp.floating):
        pad_val = -float("inf")
    else:
        # TODO(synk): bool inputs would need an OR-reduction path (iinfo fails).
        pad_val = int(jnp.iinfo(dtype).min)

    # ---- channels-last layout: (H, W, channel_groups, channel_lanes) ----------
    if nc >= 128:
        ncl, ncs = 128, -(-nc // 128)
    else:
        ncl, ncs = nc, 1
    nc_pad = ncs * ncl

    xc = x_nchw.reshape(nc, h, w)
    if nc_pad != nc:
        xc = jnp.pad(xc, ((0, nc_pad - nc), (0, 0), (0, 0)))
    # One XLA transpose pass (sanctioned by review); the kernel then reads HBM once.
    x4 = xc.reshape(ncs, ncl, h, w).transpose(2, 3, 0, 1)  # (h, w, ncs, ncl)

    h_eff = h
    if h < k:  # tiny-H edge case: keep block height == array height == k
        x4 = jnp.pad(x4, ((0, k - h), (0, 0), (0, 0), (0, 0)))
        h_eff = k

    vmem_limit, budget = _vmem_budget()
    itemsize = jnp.dtype(dtype).itemsize
    bho, bncs = _pick_blocks(ho, wo, w, ncs, ncl, itemsize, budget, k)
    bho = min(bho, max(1, h_eff // k))  # block height never exceeds the array
    bh = bho * k
    nhb = -(-ho // bho)                 # ragged last H block allowed
    ncb = -(-ncs // bncs)               # ragged last channel block allowed

    # Per-row validity: masks the ceil-mode tail rows and the ragged-block rows
    # without any full-tensor HBM pad pass.
    ht = nhb * bh
    rowmask = (jnp.arange(ht) < h).astype(jnp.float32).reshape(ht, 1, 1, 1)

    kernel = functools.partial(
        _maxpool_kernel, k=k, ragged_w=(w != wo * k), pad_val=pad_val)

    out4 = pl.pallas_call(
        kernel,
        out_shape=jax.ShapeDtypeStruct((ho, wo, ncs, ncl), dtype),
        grid=(ncb, nhb),
        in_specs=[
            pl.BlockSpec((bh, 1, 1, 1), lambda ci, hi: (hi, 0, 0, 0)),
            pl.BlockSpec((bh, w, bncs, ncl), lambda ci, hi: (hi, 0, ci, 0)),
        ],
        out_specs=pl.BlockSpec((bho, wo, bncs, ncl),
                               lambda ci, hi: (hi, 0, ci, 0)),
        compiler_params=pltpu.CompilerParams(
            dimension_semantics=("parallel", "arbitrary"),
            vmem_limit_bytes=vmem_limit),
    )(rowmask, x4)

    out = out4.transpose(2, 3, 0, 1).reshape(nc_pad, ho, wo)[:nc]
    return out.reshape(n, c, ho, wo)


def _reference_maxpool(x_nchw: jax.Array, k: int = POOL) -> jax.Array:
    """Plain-JAX reference of MaxPool2d(kernel_size=k, ceil_mode=True)."""
    n, c, h, w = x_nchw.shape
    ho, wo = -(-h // k), -(-w // k)
    if jnp.issubdtype(x_nchw.dtype, jnp.floating):
        pad_val = -jnp.inf
    else:
        pad_val = jnp.iinfo(x_nchw.dtype).min
    xp = jnp.pad(
        x_nchw,
        ((0, 0), (0, 0), (0, ho * k - h), (0, wo * k - w)),
        constant_values=pad_val,
    )
    return xp.reshape(n, c, ho, k, wo, k).max(axis=(3, 5))


if __name__ == "__main__":
    key = jax.random.PRNGKey(0)
    x = jax.random.normal(key, (2, 4, 16, 16), dtype=jnp.float32)

    y = jax.block_until_ready(jax.jit(maxpool2d_ceil)(x))

    assert y.shape == (2, 4, 6, 6), y.shape  # ceil((16-3)/3)+1 = 6
    y_ref = _reference_maxpool(x)
    if not bool(jnp.array_equal(y, y_ref)):
        raise ValueError("Pallas maxpool does not match reference")

    print("KERNEL_OK")
</pallas_src>

<mosaic_0001>
module attributes {stable_mosaic.version = 11 : i64} {
  func.func @_maxpool_kernel(%arg0: i32, %arg1: i32, %arg2: memref<15x1x1x1xf32, #tpu.memory_space<vmem>>, %arg3: memref<15x16x1x8xf32, #tpu.memory_space<vmem>>, %arg4: memref<5x6x1x8xf32, #tpu.memory_space<vmem>>) attributes {dimension_semantics = [#tpu.dimension_semantics<parallel>, #tpu.dimension_semantics<arbitrary>], iteration_bounds = array<i64: 1, 2>, scalar_prefetch = 0 : i64, scratch_operands = 0 : i64, tpu.core_type = #tpu.core_type<tc>, window_params = [{transform_indices = @transform_0, window_bounds = array<i64: 15, 1, 1, 1>}, {transform_indices = @transform_1, window_bounds = array<i64: 15, 16, 1, 8>}, {transform_indices = @transform_2, window_bounds = array<i64: 5, 6, 1, 8>}]} {
    %c0 = arith.constant 0 : index
    %c0_0 = arith.constant 0 : index
    %c0_1 = arith.constant 0 : index
    %c0_2 = arith.constant 0 : index
    %0 = vector.load %arg3[%c0, %c0_0, %c0_1, %c0_2] : memref<15x16x1x8xf32, #tpu.memory_space<vmem>>, vector<15x16x1x8xf32>
    %c0_3 = arith.constant 0 : index
    %c0_4 = arith.constant 0 : index
    %c0_5 = arith.constant 0 : index
    %c0_6 = arith.constant 0 : index
    %1 = vector.load %arg2[%c0_3, %c0_4, %c0_5, %c0_6] : memref<15x1x1x1xf32, #tpu.memory_space<vmem>>, vector<15x1x1x1xf32>
    %cst = arith.constant 5.000000e-01 : f32
    %2 = vector.broadcast %cst : f32 to vector<15x1x1x1xf32>
    %3 = arith.cmpf ogt, %1, %2 : vector<15x1x1x1xf32>
    %cst_7 = arith.constant 0xFF800000 : f32
    %4 = vector.shape_cast %3 : vector<15x1x1x1xi1> to vector<15x1x1x1xi1>
    %5 = vector.broadcast %4 : vector<15x1x1x1xi1> to vector<15x16x1x8xi1>
    %6 = vector.broadcast %cst_7 : f32 to vector<15x16x1x8xf32>
    %7 = arith.select %5, %0, %6 : vector<15x16x1x8xi1>, vector<15x16x1x8xf32>
    %8 = vector.shape_cast %7 : vector<15x16x1x8xf32> to vector<5x3x16x1x8xf32>
    %9 = vector.extract_strided_slice %8 {offsets = [0, 0, 0, 0, 0], sizes = [5, 1, 16, 1, 8], strides = [1, 1, 1, 1, 1]} : vector<5x3x16x1x8xf32> to vector<5x1x16x1x8xf32>
    %10 = vector.shape_cast %9 : vector<5x1x16x1x8xf32> to vector<5x16x1x8xf32>
    %11 = vector.extract_strided_slice %8 {offsets = [0, 1, 0, 0, 0], sizes = [5, 1, 16, 1, 8], strides = [1, 1, 1, 1, 1]} : vector<5x3x16x1x8xf32> to vector<5x1x16x1x8xf32>
    %12 = vector.shape_cast %11 : vector<5x1x16x1x8xf32> to vector<5x16x1x8xf32>
    %13 = arith.maximumf %10, %12 : vector<5x16x1x8xf32>
    %14 = vector.extract_strided_slice %8 {offsets = [0, 2, 0, 0, 0], sizes = [5, 1, 16, 1, 8], strides = [1, 1, 1, 1, 1]} : vector<5x3x16x1x8xf32> to vector<5x1x16x1x8xf32>
    %15 = vector.shape_cast %14 : vector<5x1x16x1x8xf32> to vector<5x16x1x8xf32>
    %16 = arith.maximumf %13, %15 : vector<5x16x1x8xf32>
    %17 = vector.extract_strided_slice %16 {offsets = [0, 0, 0, 0], sizes = [5, 15, 1, 8], strides = [1, 1, 1, 1]} : vector<5x16x1x8xf32> to vector<5x15x1x8xf32>
    %18 = vector.shape_cast %17 : vector<5x15x1x8xf32> to vector<5x5x3x1x8xf32>
    %19 = vector.extract_strided_slice %18 {offsets = [0, 0, 0, 0, 0], sizes = [5, 5, 1, 1, 8], strides = [1, 1, 1, 1, 1]} : vector<5x5x3x1x8xf32> to vector<5x5x1x1x8xf32>
    %20 = vector.shape_cast %19 : vector<5x5x1x1x8xf32> to vector<5x5x1x8xf32>
    %21 = vector.extract_strided_slice %18 {offsets = [0, 0, 1, 0, 0], sizes = [5, 5, 1, 1, 8], strides = [1, 1, 1, 1, 1]} : vector<5x5x3x1x8xf32> to vector<5x5x1x1x8xf32>
    %22 = vector.shape_cast %21 : vector<5x5x1x1x8xf32> to vector<5x5x1x8xf32>
    %23 = arith.maximumf %20, %22 : vector<5x5x1x8xf32>
    %24 = vector.extract_strided_slice %18 {offsets = [0, 0, 2, 0, 0], sizes = [5, 5, 1, 1, 8], strides = [1, 1, 1, 1, 1]} : vector<5x5x3x1x8xf32> to vector<5x5x1x1x8xf32>
    %25 = vector.shape_cast %24 : vector<5x5x1x1x8xf32> to vector<5x5x1x8xf32>
    %26 = arith.maximumf %23, %25 : vector<5x5x1x8xf32>
    %27 = vector.extract_strided_slice %16 {offsets = [0, 15, 0, 0], sizes = [5, 1, 1, 8], strides = [1, 1, 1, 1]} : vector<5x16x1x8xf32> to vector<5x1x1x8xf32>
    %28 = vector.shape_cast %27 : vector<5x1x1x8xf32> to vector<5x1x8xf32>
    %29 = vector.shape_cast %28 : vector<5x1x8xf32> to vector<5x1x1x8xf32>
    %30 = tpu.concatenate %26, %29 in 1 : vector<5x5x1x8xf32>, vector<5x1x1x8xf32> -> vector<5x6x1x8xf32>
    %c0_8 = arith.constant 0 : index
    %c0_9 = arith.constant 0 : index
    %c0_10 = arith.constant 0 : index
    %c0_11 = arith.constant 0 : index
    %31 = vector.load %arg4[%c0_8, %c0_9, %c0_10, %c0_11] : memref<5x6x1x8xf32, #tpu.memory_space<vmem>>, vector<5x6x1x8xf32>
    tpu.vector_store %arg4[%c0_8, %c0_9, %c0_10, %c0_11], %30 {strides = array<i32>} : memref<5x6x1x8xf32, #tpu.memory_space<vmem>>, vector<5x6x1x8xf32>,
    return
  }
  func.func @transform_0(%arg0: i32, %arg1: i32) -> (i32, i32, i32, i32) {
    %c0_i32 = arith.constant 0 : i32
    %c0_i32_0 = arith.constant 0 : i32
    %c0_i32_1 = arith.constant 0 : i32
    %c0_i32_2 = arith.constant 0 : i32
    return %arg1, %c0_i32, %c0_i32_0, %c0_i32_1 : i32, i32, i32, i32
  }
  func.func @transform_1(%arg0: i32, %arg1: i32) -> (i32, i32, i32, i32) {
    %c0_i32 = arith.constant 0 : i32
    %c0_i32_0 = arith.constant 0 : i32
    %c0_i32_1 = arith.constant 0 : i32
    return %arg1, %c0_i32, %arg0, %c0_i32_0 : i32, i32, i32, i32
  }
  func.func @transform_2(%arg0: i32, %arg1: i32) -> (i32, i32, i32, i32) {
    %c0_i32 = arith.constant 0 : i32
    %c0_i32_0 = arith.constant 0 : i32
    %c0_i32_1 = arith.constant 0 : i32
    return %arg1, %c0_i32, %arg0, %c0_i32_0 : i32, i32, i32, i32
  }
}

</mosaic_0001>

<llo_original>
// kernel: maxpool2d_ceil.1
$region0: #{maxpool2d_ceil.1}
  #allocation0 [shape = 'u32[]', space=smem, size = 0x4, offset = 0x4, fixed_abs, tag = 'smem constant byte address 0x4 - core index']
  #allocation1 [shape = 'u32[72,128]{1,0:T(1,128)}', space=vmem, size = 0x9000, scoped, tag = 'internal scratch']
  %s0 = inlined_call_operand.vmem [shape: f32[30,1,1,1], index: 0, kind: input, shape index: {}]
  %s1 = inlined_call_operand.vmem [shape: f32[16,16,1,8], index: 1, kind: input, shape index: {}]
  %s2 = inlined_call_operand.vmem [shape: f32[6,6,1,8], index: 2, kind: output, shape index: {}]
  %s3 = sld [smem:[#allocation0]]
  $region103: #{maxpool2d_ceil.1} parent=0
    _
  %s5 = ssub.s32 1, %s3
  %s6 = scalar_select 0, %s5, %s3
  $region1: #{maxpool2d_ceil.1} parent=0
    #allocation2 [shape = 'u8[30720]{0}', space=vmem, size = 0x7800, scoped, tag = 'output window, operand 0']
    loop: start=0, step=1, limit=4
    $region2: #{maxpool2d_ceil.1} parent=1 // loop_pre_header
      _
    $region3: #{maxpool2d_ceil.1} parent=1 // loop_header
      %s8 = sphi 0, %s12
      %p9 = scmp.ge.s32.totalorder %s8, 4
      %s15 = sphi 0, %s27
      %s16 = sphi 0, %s23
      %s17 = sphi 0, %s15
      %s18 = sphi 0, %s16
      %s19 = sphi 0, %s17
      %s20 = sphi 0, %s18
      %s30 = sphi 0, %s32
      %s33 = sphi 0, %s30
      %s34 = sphi 0, %s33
      %s50 = sphi 0, %s34
      %s58 = sphi 0, %s60
      %s61 = sphi 0, %s58
      %s62 = sphi 0, %s61
      %s78 = sphi 0, %s62
      %s86 = sphi 0, %s88
      %s89 = sphi 0, %s86
      %s90 = sphi 0, %s89
      %s106 = sphi 0, %s90
    $region4: #{maxpool2d_ceil.1} parent=1 // loop_header_branch
      %11 = sbr.rel (%p9) target = $region8
    $region5: #{maxpool2d_ceil.1} parent=1 // loop_body
      %s13 = ssub.s32 %s8, 1
      %s14 = ssub.s32 %s8, 2
      %s21 = sadd.s32 1, %s16
      %p22 = scmp.ge.s32.totalorder %s21, 2
      %s23 = scalar_select %p22, 0, %s21
      %s24 = sadd.s32 1, %s15
      %s25 = scalar_select %p22, %s24, %s15
      %p26 = scmp.ge.s32.totalorder %s25, 1
      %s27 = scalar_select %p26, 0, %s25
      %s28 = ssub.s32 %s16, %s23
      %p29 = scmp.eq.s32.totalorder %s28, 0
      %s31 = sadd.s32 %s30, 1
      %s32 = scalar_select %p29, %s30, %s31
      %p35 = pneg %p29
      %p36 = scmp.eq.s32.totalorder %s8, 1
      %p37 = por %p35, %p36
      %p38 = scmp.ne.s32.totalorder %s30, %s33
      %p39 = scmp.eq.s32.totalorder %s8, 0
      %p40 = por %p38, %p39
      %p41 = scmp.ne.s32.totalorder %s30, %s33
      %p42 = scmp.eq.s32.totalorder %s13, 1
      %p43 = por %p41, %p42
      %p44 = scmp.ne.s32.totalorder %s33, %s34
      %p45 = scmp.eq.s32.totalorder %s13, 0
      %p46 = por %p44, %p45
      %p47 = scmp.ne.s32.totalorder %s33, %s34
      %p48 = scmp.eq.s32.totalorder %s14, 1
      %p49 = por %p47, %p48
      %p51 = scmp.ne.s32.totalorder %s34, %s50
      %p52 = scmp.eq.s32.totalorder %s14, 0
      %p53 = por %p51, %p52
      %s54 = ssub.s32 %s16, %s23
      %s55 = ssub.s32 %s15, %s27
      %s56 = sor.u32 %s54, %s55
      %p57 = scmp.eq.s32.totalorder %s56, 0
      %s59 = sadd.s32 %s58, 1
      %s60 = scalar_select %p57, %s58, %s59
      %p63 = pneg %p57
      %p64 = scmp.eq.s32.totalorder %s8, 1
      %p65 = por %p63, %p64
      %p66 = scmp.ne.s32.totalorder %s58, %s61
      %p67 = scmp.eq.s32.totalorder %s8, 0
      %p68 = por %p66, %p67
      %p69 = scmp.ne.s32.totalorder %s58, %s61
      %p70 = scmp.eq.s32.totalorder %s13, 1
      %p71 = por %p69, %p70
      %p72 = scmp.ne.s32.totalorder %s61, %s62
      %p73 = scmp.eq.s32.totalorder %s13, 0
      %p74 = por %p72, %p73
      %p75 = scmp.ne.s32.totalorder %s61, %s62
      %p76 = scmp.eq.s32.totalorder %s14, 1
      %p77 = por %p75, %p76
      %p79 = scmp.ne.s32.totalorder %s62, %s78
      %p80 = scmp.eq.s32.totalorder %s14, 0
      %p81 = por %p79, %p80
      %s82 = ssub.s32 %s16, %s23
      %s83 = ssub.s32 %s15, %s27
      %s84 = sor.u32 %s82, %s83
      %p85 = scmp.eq.s32.totalorder %s84, 0
      %s87 = sadd.s32 %s86, 1
      %s88 = scalar_select %p85, %s86, %s87
      %p91 = pneg %p85
      %p92 = scmp.eq.s32.totalorder %s8, 1
      %p93 = por %p91, %p92
      %p94 = scmp.ne.s32.totalorder %s86, %s89
      %p95 = scmp.eq.s32.totalorder %s8, 0
      %p96 = por %p94, %p95
      %p97 = scmp.ne.s32.totalorder %s86, %s89
      %p98 = scmp.eq.s32.totalorder %s13, 1
      %p99 = por %p97, %p98
      %p100 = scmp.ne.s32.totalorder %s89, %s90
      %p101 = scmp.eq.s32.totalorder %s13, 0
      %p102 = por %p100, %p101
      %p103 = scmp.ne.s32.totalorder %s89, %s90
      %p104 = scmp.eq.s32.totalorder %s14, 1
      %p105 = por %p103, %p104
      %p107 = scmp.ne.s32.totalorder %s90, %s106
      %p108 = scmp.eq.s32.totalorder %s14, 0
      %p109 = por %p107, %p108
      %p110 = scmp.le.s32.totalorder 1, %s8
      %p111 = scmp.lt.s32.totalorder %s8, 3
      %p112 = pnand %p110, %p111
      %p113 = pneg %p112
      // Predicated region
      $region9: #{maxpool2d_ceil.1} parent=5 // pred_check
        _
      $region10: #{maxpool2d_ceil.1} parent=5 // pred_check_branch
        %115 = sbr.rel (%p112) target = $region12
      $region11: #{maxpool2d_ceil.1} parent=5 // pred_region
        %s116 = ssub.s32 %s8, 1
      $region12: #{maxpool2d_ceil.1} parent=5 // pred_fallthru
        _
      %p117 = scmp.lt.s32.totalorder %s8, 2
      // Predicated region
      $region13: #{maxpool2d_ceil.1} parent=5 // pred_check
        %p118 = pneg %p117
      $region14: #{maxpool2d_ceil.1} parent=5 // pred_check_branch
        %120 = sbr.rel (%p118) target = $region16
      $region15: #{maxpool2d_ceil.1} parent=5 // pred_region
        // Predicated region
        $region17: #{maxpool2d_ceil.1} parent=15 // pred_check
          %p121 = pneg %p40
        $region18: #{maxpool2d_ceil.1} parent=15 // pred_check_branch
          %123 = sbr.rel (%p121) target = $region20
        $region19: #{maxpool2d_ceil.1} parent=15 // pred_region
          %s124 = smul.u32 15, %s16
          %p125 = scmp.lt.s32.totalorder %s124, 29
          %s126 = scalar_select %p125, %s124, 29
          %s127 = scalar_lea.vmem %s0, %s126
          %s128 = smul.u32 15, %s16
        $region20: #{maxpool2d_ceil.1} parent=15 // pred_fallthru
          _
        // Predicated region
        $region21: #{maxpool2d_ceil.1} parent=15 // pred_check
          %p129 = pneg %p68
        $region22: #{maxpool2d_ceil.1} parent=15 // pred_check_branch
          %131 = sbr.rel (%p129) target = $region24
        $region23: #{maxpool2d_ceil.1} parent=15 // pred_region
          %s132 = smul.u32 15, %s16
          %s133 = ssub.s32 16, %s132
          %p134 = scmp.lt.s32.totalorder %s133, 15
          %s135 = scalar_select %p134, %s133, 15
          %s136 = smul.u32 %s135, 16
          %p137 = scmp.lt.s32.totalorder %s132, 15
          %s138 = scalar_select %p137, %s132, 15
          %p139 = scmp.lt.s32.totalorder %s15, 0
          %s140 = scalar_select %p139, %s15, 0
          %s141 = smul.addr %s138, 16
          %s142 = sadd.s32 %s140, %s141
          %s143 = scalar_lea.vmem %s1, %s142
          %s144 = smul.u32 15, %s16
          %s145 = ssub.s32 16, %s144
          %p146 = scmp.lt.s32.totalorder %s145, 15
          %s147 = scalar_select %p146, %s145, 15
          %s148 = smul.u32 %s147, 16
        $region24: #{maxpool2d_ceil.1} parent=15 // pred_fallthru
          _
      $region16: #{maxpool2d_ceil.1} parent=5 // pred_fallthru
        _
      %p149 = scmp.le.s32.totalorder 1, %s8
      %p150 = scmp.lt.s32.totalorder %s8, 3
      %p151 = pnand %p149, %p150
      %p152 = pneg %p151
      // Predicated region
      $region25: #{maxpool2d_ceil.1} parent=5 // pred_check
        _
      $region26: #{maxpool2d_ceil.1} parent=5 // pred_check_branch
        %154 = sbr.rel (%p151) target = $region28
      $region27: #{maxpool2d_ceil.1} parent=5 // pred_region
        %s155 = ssub.s32 %s8, 1
        %s156 = smul.u32 15, %s18
        %p157 = scmp.lt.s32.totalorder %s156, 29
        %s158 = scalar_select %p157, %s156, 29
        %s159 = scalar_lea.vmem %s0, %s158
        %p160 = pneg %p46
        %p161 = pneg %p43
        %s162 = smul.u32 15, %s18
        %s163 = ssub.s32 16, %s162
        %p164 = scmp.lt.s32.totalorder %s163, 15
        %s165 = scalar_select %p164, %s163, 15
        %s166 = smul.u32 %s165, 16
        %p167 = scmp.lt.s32.totalorder %s162, 15
        %s168 = scalar_select %p167, %s162, 15
        %p169 = scmp.lt.s32.totalorder %s17, 0
        %s170 = scalar_select %p169, %s17, 0
        %s171 = smul.addr %s168, 16
        %s172 = sadd.s32 %s170, %s171
        %s173 = scalar_lea.vmem %s1, %s172
        %p174 = pneg %p74
        %p175 = pneg %p71
        %p176 = pneg %p102
        %p177 = pneg %p99
        %s178 = sand.u32 %s89, 1
        %s179 = sand.u32 %s89, 1
        %s180 = smul.addr %s179, 30
        %s181 = scalar_lea.vmem [#allocation2], %s180
        %s182 = smul.u32 15, %s18
        %p183 = scmp.lt.s32.totalorder %s182, 29
        %s184 = scalar_select %p183, %s182, 29
        %s185 = scalar_lea.vmem %s0, %s184
        %s186 = smul.u32 15, %s18
        %s187 = smul.u32 15, %s18
        %s188 = ssub.s32 16, %s187
        %p189 = scmp.lt.s32.totalorder %s188, 15
        %s190 = scalar_select %p189, %s188, 15
        %s191 = smul.u32 %s190, 16
        %p192 = scmp.lt.s32.totalorder %s187, 15
        %s193 = scalar_select %p192, %s187, 15
        %p194 = scmp.lt.s32.totalorder %s17, 0
        %s195 = scalar_select %p194, %s17, 0
        %s196 = smul.addr %s193, 16
        %s197 = sadd.s32 %s195, %s196
        %s198 = scalar_lea.vmem %s1, %s197
        %s199 = smul.u32 15, %s18
        %s200 = ssub.s32 16, %s199
        %p201 = scmp.lt.s32.totalorder %s200, 15
        %s202 = scalar_select %p201, %s200, 15
        %s203 = smul.u32 %s202, 16
        %s204 = smul.u32 5, %s18
        %s205 = ssub.s32 6, %s204
        %p206 = scmp.lt.s32.totalorder %s205, 5
        %s207 = scalar_select %p206, %s205, 5
        %s208 = smul.u32 %s207, 6
        %v209 = vld [vmem:[%s198] sm:$0x1]
        %v210 = vld [vmem:[%s198 + $0x1] sm:$0x1]
        %v211 = vld [vmem:[%s198 + $0x2] sm:$0x1]
        %v212 = vld [vmem:[%s198 + $0x3] sm:$0x1]
        %v213 = vld [vmem:[%s198 + $0x4] sm:$0x1]
        %v214 = vld [vmem:[%s198 + $0x5] sm:$0x1]
        %v215 = vld [vmem:[%s198 + $0x6] sm:$0x1]
        %v216 = vld [vmem:[%s198 + $0x7] sm:$0x1]
        %v217 = vld [vmem:[%s198 + $0x8] sm:$0x1]
        %v218 = vld [vmem:[%s198 + $0x9] sm:$0x1]
        %v219 = vld [vmem:[%s198 + $0xa] sm:$0x1]
        %v220 = vld [vmem:[%s198 + $0xb] sm:$0x1]
        %v221 = vld [vmem:[%s198 + $0xc] sm:$0x1]
        %v222 = vld [vmem:[%s198 + $0xd] sm:$0x1]
        %v223 = vld [vmem:[%s198 + $0xe] sm:$0x1]
        %v224 = vld [vmem:[%s198 + $0xf] sm:$0x1]
        %v225 = vld [vmem:[%s198 + $0x10] sm:$0x1]
        %v226 = vld [vmem:[%s198 + $0x11] sm:$0x1]
        %v227 = vld [vmem:[%s198 + $0x12] sm:$0x1]
        %v228 = vld [vmem:[%s198 + $0x13] sm:$0x1]
        %v229 = vld [vmem:[%s198 + $0x14] sm:$0x1]
        %v230 = vld [vmem:[%s198 + $0x15] sm:$0x1]
        %v231 = vld [vmem:[%s198 + $0x16] sm:$0x1]
        %v232 = vld [vmem:[%s198 + $0x17] sm:$0x1]
        %v233 = vld [vmem:[%s198 + $0x18] sm:$0x1]
        %v234 = vld [vmem:[%s198 + $0x19] sm:$0x1]
        %v235 = vld [vmem:[%s198 + $0x1a] sm:$0x1]
        %v236 = vld [vmem:[%s198 + $0x1b] sm:$0x1]
        %v237 = vld [vmem:[%s198 + $0x1c] sm:$0x1]
        %v238 = vld [vmem:[%s198 + $0x1d] sm:$0x1]
        %v239 = vld [vmem:[%s198 + $0x1e] sm:$0x1]
        %v240 = vld [vmem:[%s198 + $0x1f] sm:$0x1]
        %v241 = vld [vmem:[%s198 + $0x20] sm:$0x1]
        %v242 = vld [vmem:[%s198 + $0x21] sm:$0x1]
        %v243 = vld [vmem:[%s198 + $0x22] sm:$0x1]
        %v244 = vld [vmem:[%s198 + $0x23] sm:$0x1]
        %v245 = vld [vmem:[%s198 + $0x24] sm:$0x1]
        %v246 = vld [vmem:[%s198 + $0x25] sm:$0x1]
        %v247 = vld [vmem:[%s198 + $0x26] sm:$0x1]
        %v248 = vld [vmem:[%s198 + $0x27] sm:$0x1]
        %v249 = vld [vmem:[%s198 + $0x28] sm:$0x1]
        %v250 = vld [vmem:[%s198 + $0x29] sm:$0x1]
        %v251 = vld [vmem:[%s198 + $0x2a] sm:$0x1]
        %v252 = vld [vmem:[%s198 + $0x2b] sm:$0x1]
        %v253 = vld [vmem:[%s198 + $0x2c] sm:$0x1]
        %v254 = vld [vmem:[%s198 + $0x2d] sm:$0x1]
        %v255 = vld [vmem:[%s198 + $0x2e] sm:$0x1]
        %v256 = vld [vmem:[%s198 + $0x2f] sm:$0x1]
        %v257 = vld [vmem:[%s198 + $0x30] sm:$0x1]
        %v258 = vld [vmem:[%s198 + $0x31] sm:$0x1]
        %v259 = vld [vmem:[%s198 + $0x32] sm:$0x1]
        %v260 = vld [vmem:[%s198 + $0x33] sm:$0x1]
        %v261 = vld [vmem:[%s198 + $0x34] sm:$0x1]
        %v262 = vld [vmem:[%s198 + $0x35] sm:$0x1]
        %v263 = vld [vmem:[%s198 + $0x36] sm:$0x1]
        %v264 = vld [vmem:[%s198 + $0x37] sm:$0x1]
        %v265 = vld [vmem:[%s198 + $0x38] sm:$0x1]
        %v266 = vld [vmem:[%s198 + $0x39] sm:$0x1]
        %v267 = vld [vmem:[%s198 + $0x3a] sm:$0x1]
        %v268 = vld [vmem:[%s198 + $0x3b] sm:$0x1]
        %v269 = vld [vmem:[%s198 + $0x3c] sm:$0x1]
        %v270 = vld [vmem:[%s198 + $0x3d] sm:$0x1]
        %v271 = vld [vmem:[%s198 + $0x3e] sm:$0x1]
        %v272 = vld [vmem:[%s198 + $0x3f] sm:$0x1]
        %v273 = vld [vmem:[%s198 + $0x40] sm:$0x1]
        %v274 = vld [vmem:[%s198 + $0x41] sm:$0x1]
        %v275 = vld [vmem:[%s198 + $0x42] sm:$0x1]
        %v276 = vld [vmem:[%s198 + $0x43] sm:$0x1]
        %v277 = vld [vmem:[%s198 + $0x44] sm:$0x1]
        %v278 = vld [vmem:[%s198 + $0x45] sm:$0x1]
        %v279 = vld [vmem:[%s198 + $0x46] sm:$0x1]
        %v280 = vld [vmem:[%s198 + $0x47] sm:$0x1]
        %v281 = vld [vmem:[%s198 + $0x48] sm:$0x1]
        %v282 = vld [vmem:[%s198 + $0x49] sm:$0x1]
        %v283 = vld [vmem:[%s198 + $0x4a] sm:$0x1]
        %v284 = vld [vmem:[%s198 + $0x4b] sm:$0x1]
        %v285 = vld [vmem:[%s198 + $0x4c] sm:$0x1]
        %v286 = vld [vmem:[%s198 + $0x4d] sm:$0x1]
        %v287 = vld [vmem:[%s198 + $0x4e] sm:$0x1]
        %v288 = vld [vmem:[%s198 + $0x4f] sm:$0x1]
        %v289 = vld [vmem:[%s198 + $0x50] sm:$0x1]
        %v290 = vld [vmem:[%s198 + $0x51] sm:$0x1]
        %v291 = vld [vmem:[%s198 + $0x52] sm:$0x1]
        %v292 = vld [vmem:[%s198 + $0x53] sm:$0x1]
        %v293 = vld [vmem:[%s198 + $0x54] sm:$0x1]
        %v294 = vld [vmem:[%s198 + $0x55] sm:$0x1]
        %v295 = vld [vmem:[%s198 + $0x56] sm:$0x1]
        %v296 = vld [vmem:[%s198 + $0x57] sm:$0x1]
        %v297 = vld [vmem:[%s198 + $0x58] sm:$0x1]
        %v298 = vld [vmem:[%s198 + $0x59] sm:$0x1]
        %v299 = vld [vmem:[%s198 + $0x5a] sm:$0x1]
        %v300 = vld [vmem:[%s198 + $0x5b] sm:$0x1]
        %v301 = vld [vmem:[%s198 + $0x5c] sm:$0x1]
        %v302 = vld [vmem:[%s198 + $0x5d] sm:$0x1]
        %v303 = vld [vmem:[%s198 + $0x5e] sm:$0x1]
        %v304 = vld [vmem:[%s198 + $0x5f] sm:$0x1]
        %v305 = vld [vmem:[%s198 + $0x60] sm:$0x1]
        %v306 = vld [vmem:[%s198 + $0x61] sm:$0x1]
        %v307 = vld [vmem:[%s198 + $0x62] sm:$0x1]
        %v308 = vld [vmem:[%s198 + $0x63] sm:$0x1]
        %v309 = vld [vmem:[%s198 + $0x64] sm:$0x1]
        %v310 = vld [vmem:[%s198 + $0x65] sm:$0x1]
        %v311 = vld [vmem:[%s198 + $0x66] sm:$0x1]
        %v312 = vld [vmem:[%s198 + $0x67] sm:$0x1]
        %v313 = vld [vmem:[%s198 + $0x68] sm:$0x1]
        %v314 = vld [vmem:[%s198 + $0x69] sm:$0x1]
        %v315 = vld [vmem:[%s198 + $0x6a] sm:$0x1]
        %v316 = vld [vmem:[%s198 + $0x6b] sm:$0x1]
        %v317 = vld [vmem:[%s198 + $0x6c] sm:$0x1]
        %v318 = vld [vmem:[%s198 + $0x6d] sm:$0x1]
        %v319 = vld [vmem:[%s198 + $0x6e] sm:$0x1]
        %v320 = vld [vmem:[%s198 + $0x6f] sm:$0x1]
        %v321 = vld [vmem:[%s198 + $0x70] sm:$0x1]
        %v322 = vld [vmem:[%s198 + $0x71] sm:$0x1]
        %v323 = vld [vmem:[%s198 + $0x72] sm:$0x1]
        %v324 = vld [vmem:[%s198 + $0x73] sm:$0x1]
        %v325 = vld [vmem:[%s198 + $0x74] sm:$0x1]
        %v326 = vld [vmem:[%s198 + $0x75] sm:$0x1]
        %v327 = vld [vmem:[%s198 + $0x76] sm:$0x1]
        %v328 = vld [vmem:[%s198 + $0x77] sm:$0x1]
        %v329 = vld [vmem:[%s198 + $0x78] sm:$0x1]
        %v330 = vld [vmem:[%s198 + $0x79] sm:$0x1]
        %v331 = vld [vmem:[%s198 + $0x7a] sm:$0x1]
        %v332 = vld [vmem:[%s198 + $0x7b] sm:$0x1]
        %v333 = vld [vmem:[%s198 + $0x7c] sm:$0x1]
        %v334 = vld [vmem:[%s198 + $0x7d] sm:$0x1]
        %v335 = vld [vmem:[%s198 + $0x7e] sm:$0x1]
        %v336 = vld [vmem:[%s198 + $0x7f] sm:$0x1]
        %v337 = vld [vmem:[%s198 + $0x80] sm:$0x1]
        %v338 = vld [vmem:[%s198 + $0x81] sm:$0x1]
        %v339 = vld [vmem:[%s198 + $0x82] sm:$0x1]
        %v340 = vld [vmem:[%s198 + $0x83] sm:$0x1]
        %v341 = vld [vmem:[%s198 + $0x84] sm:$0x1]
        %v342 = vld [vmem:[%s198 + $0x85] sm:$0x1]
        %v343 = vld [vmem:[%s198 + $0x86] sm:$0x1]
        %v344 = vld [vmem:[%s198 + $0x87] sm:$0x1]
        %v345 = vld [vmem:[%s198 + $0x88] sm:$0x1]
        %v346 = vld [vmem:[%s198 + $0x89] sm:$0x1]
        %v347 = vld [vmem:[%s198 + $0x8a] sm:$0x1]
        %v348 = vld [vmem:[%s198 + $0x8b] sm:$0x1]
        %v349 = vld [vmem:[%s198 + $0x8c] sm:$0x1]
        %v350 = vld [vmem:[%s198 + $0x8d] sm:$0x1]
        %v351 = vld [vmem:[%s198 + $0x8e] sm:$0x1]
        %v352 = vld [vmem:[%s198 + $0x8f] sm:$0x1]
        %v353 = vld [vmem:[%s198 + $0x90] sm:$0x1]
        %v354 = vld [vmem:[%s198 + $0x91] sm:$0x1]
        %v355 = vld [vmem:[%s198 + $0x92] sm:$0x1]
        %v356 = vld [vmem:[%s198 + $0x93] sm:$0x1]
        %v357 = vld [vmem:[%s198 + $0x94] sm:$0x1]
        %v358 = vld [vmem:[%s198 + $0x95] sm:$0x1]
        %v359 = vld [vmem:[%s198 + $0x96] sm:$0x1]
        %v360 = vld [vmem:[%s198 + $0x97] sm:$0x1]
        %v361 = vld [vmem:[%s198 + $0x98] sm:$0x1]
        %v362 = vld [vmem:[%s198 + $0x99] sm:$0x1]
        %v363 = vld [vmem:[%s198 + $0x9a] sm:$0x1]
        %v364 = vld [vmem:[%s198 + $0x9b] sm:$0x1]
        %v365 = vld [vmem:[%s198 + $0x9c] sm:$0x1]
        %v366 = vld [vmem:[%s198 + $0x9d] sm:$0x1]
        %v367 = vld [vmem:[%s198 + $0x9e] sm:$0x1]
        %v368 = vld [vmem:[%s198 + $0x9f] sm:$0x1]
        %v369 = vld [vmem:[%s198 + $0xa0] sm:$0x1]
        %v370 = vld [vmem:[%s198 + $0xa1] sm:$0x1]
        %v371 = vld [vmem:[%s198 + $0xa2] sm:$0x1]
        %v372 = vld [vmem:[%s198 + $0xa3] sm:$0x1]
        %v373 = vld [vmem:[%s198 + $0xa4] sm:$0x1]
        %v374 = vld [vmem:[%s198 + $0xa5] sm:$0x1]
        %v375 = vld [vmem:[%s198 + $0xa6] sm:$0x1]
        %v376 = vld [vmem:[%s198 + $0xa7] sm:$0x1]
        %v377 = vld [vmem:[%s198 + $0xa8] sm:$0x1]
        %v378 = vld [vmem:[%s198 + $0xa9] sm:$0x1]
        %v379 = vld [vmem:[%s198 + $0xaa] sm:$0x1]
        %v380 = vld [vmem:[%s198 + $0xab] sm:$0x1]
        %v381 = vld [vmem:[%s198 + $0xac] sm:$0x1]
        %v382 = vld [vmem:[%s198 + $0xad] sm:$0x1]
        %v383 = vld [vmem:[%s198 + $0xae] sm:$0x1]
        %v384 = vld [vmem:[%s198 + $0xaf] sm:$0x1]
        %v385 = vld [vmem:[%s198 + $0xb0] sm:$0x1]
        %v386 = vld [vmem:[%s198 + $0xb1] sm:$0x1]
        %v387 = vld [vmem:[%s198 + $0xb2] sm:$0x1]
        %v388 = vld [vmem:[%s198 + $0xb3] sm:$0x1]
        %v389 = vld [vmem:[%s198 + $0xb4] sm:$0x1]
        %v390 = vld [vmem:[%s198 + $0xb5] sm:$0x1]
        %v391 = vld [vmem:[%s198 + $0xb6] sm:$0x1]
        %v392 = vld [vmem:[%s198 + $0xb7] sm:$0x1]
        %v393 = vld [vmem:[%s198 + $0xb8] sm:$0x1]
        %v394 = vld [vmem:[%s198 + $0xb9] sm:$0x1]
        %v395 = vld [vmem:[%s198 + $0xba] sm:$0x1]
        %v396 = vld [vmem:[%s198 + $0xbb] sm:$0x1]
        %v397 = vld [vmem:[%s198 + $0xbc] sm:$0x1]
        %v398 = vld [vmem:[%s198 + $0xbd] sm:$0x1]
        %v399 = vld [vmem:[%s198 + $0xbe] sm:$0x1]
        %v400 = vld [vmem:[%s198 + $0xbf] sm:$0x1]
        %v401 = vld [vmem:[%s198 + $0xc0] sm:$0x1]
        %v402 = vld [vmem:[%s198 + $0xc1] sm:$0x1]
        %v403 = vld [vmem:[%s198 + $0xc2] sm:$0x1]
        %v404 = vld [vmem:[%s198 + $0xc3] sm:$0x1]
        %v405 = vld [vmem:[%s198 + $0xc4] sm:$0x1]
        %v406 = vld [vmem:[%s198 + $0xc5] sm:$0x1]
        %v407 = vld [vmem:[%s198 + $0xc6] sm:$0x1]
        %v408 = vld [vmem:[%s198 + $0xc7] sm:$0x1]
        %v409 = vld [vmem:[%s198 + $0xc8] sm:$0x1]
        %v410 = vld [vmem:[%s198 + $0xc9] sm:$0x1]
        %v411 = vld [vmem:[%s198 + $0xca] sm:$0x1]
        %v412 = vld [vmem:[%s198 + $0xcb] sm:$0x1]
        %v413 = vld [vmem:[%s198 + $0xcc] sm:$0x1]
        %v414 = vld [vmem:[%s198 + $0xcd] sm:$0x1]
        %v415 = vld [vmem:[%s198 + $0xce] sm:$0x1]
        %v416 = vld [vmem:[%s198 + $0xcf] sm:$0x1]
        %v417 = vld [vmem:[%s198 + $0xd0] sm:$0x1]
        %v418 = vld [vmem:[%s198 + $0xd1] sm:$0x1]
        %v419 = vld [vmem:[%s198 + $0xd2] sm:$0x1]
        %v420 = vld [vmem:[%s198 + $0xd3] sm:$0x1]
        %v421 = vld [vmem:[%s198 + $0xd4] sm:$0x1]
        %v422 = vld [vmem:[%s198 + $0xd5] sm:$0x1]
        %v423 = vld [vmem:[%s198 + $0xd6] sm:$0x1]
        %v424 = vld [vmem:[%s198 + $0xd7] sm:$0x1]
        %v425 = vld [vmem:[%s198 + $0xd8] sm:$0x1]
        %v426 = vld [vmem:[%s198 + $0xd9] sm:$0x1]
        %v427 = vld [vmem:[%s198 + $0xda] sm:$0x1]
        %v428 = vld [vmem:[%s198 + $0xdb] sm:$0x1]
        %v429 = vld [vmem:[%s198 + $0xdc] sm:$0x1]
        %v430 = vld [vmem:[%s198 + $0xdd] sm:$0x1]
        %v431 = vld [vmem:[%s198 + $0xde] sm:$0x1]
        %v432 = vld [vmem:[%s198 + $0xdf] sm:$0x1]
        %v433 = vld [vmem:[%s198 + $0xe0] sm:$0x1]
        %v434 = vld [vmem:[%s198 + $0xe1] sm:$0x1]
        %v435 = vld [vmem:[%s198 + $0xe2] sm:$0x1]
        %v436 = vld [vmem:[%s198 + $0xe3] sm:$0x1]
        %v437 = vld [vmem:[%s198 + $0xe4] sm:$0x1]
        %v438 = vld [vmem:[%s198 + $0xe5] sm:$0x1]
        %v439 = vld [vmem:[%s198 + $0xe6] sm:$0x1]
        %v440 = vld [vmem:[%s198 + $0xe7] sm:$0x1]
        %v441 = vld [vmem:[%s198 + $0xe8] sm:$0x1]
        %v442 = vld [vmem:[%s198 + $0xe9] sm:$0x1]
        %v443 = vld [vmem:[%s198 + $0xea] sm:$0x1]
        %v444 = vld [vmem:[%s198 + $0xeb] sm:$0x1]
        %v445 = vld [vmem:[%s198 + $0xec] sm:$0x1]
        %v446 = vld [vmem:[%s198 + $0xed] sm:$0x1]
        %v447 = vld [vmem:[%s198 + $0xee] sm:$0x1]
        %v448 = vld [vmem:[%s198 + $0xef] sm:$0x1]
        %v449 = vld [vmem:[%s185] sm:$0x1]
        %v450 = vld [vmem:[%s185 + $0x1] sm:$0x1]
        %v451 = vld [vmem:[%s185 + $0x2] sm:$0x1]
        %v452 = vld [vmem:[%s185 + $0x3] sm:$0x1]
        %v453 = vld [vmem:[%s185 + $0x4] sm:$0x1]
        %v454 = vld [vmem:[%s185 + $0x5] sm:$0x1]
        %v455 = vld [vmem:[%s185 + $0x6] sm:$0x1]
        %v456 = vld [vmem:[%s185 + $0x7] sm:$0x1]
        %v457 = vld [vmem:[%s185 + $0x8] sm:$0x1]
        %v458 = vld [vmem:[%s185 + $0x9] sm:$0x1]
        %v459 = vld [vmem:[%s185 + $0xa] sm:$0x1]
        %v460 = vld [vmem:[%s185 + $0xb] sm:$0x1]
        %v461 = vld [vmem:[%s185 + $0xc] sm:$0x1]
        %v462 = vld [vmem:[%s185 + $0xd] sm:$0x1]
        %v463 = vld [vmem:[%s185 + $0xe] sm:$0x1]
        %vm464 = vcmp.gt.f32.partialorder %v449, 0.5
        %vm465 = vcmp.gt.f32.partialorder %v450, 0.5
        %vm466 = vcmp.gt.f32.partialorder %v451, 0.5
        %vm467 = vcmp.gt.f32.partialorder %v452, 0.5
        %vm468 = vcmp.gt.f32.partialorder %v453, 0.5
        %vm469 = vcmp.gt.f32.partialorder %v454, 0.5
        %vm470 = vcmp.gt.f32.partialorder %v455, 0.5
        %vm471 = vcmp.gt.f32.partialorder %v456, 0.5
        %vm472 = vcmp.gt.f32.partialorder %v457, 0.5
        %vm473 = vcmp.gt.f32.partialorder %v458, 0.5
        %vm474 = vcmp.gt.f32.partialorder %v459, 0.5
        %vm475 = vcmp.gt.f32.partialorder %v460, 0.5
        %vm476 = vcmp.gt.f32.partialorder %v461, 0.5
        %vm477 = vcmp.gt.f32.partialorder %v462, 0.5
        %vm478 = vcmp.gt.f32.partialorder %v463, 0.5
        %v479 = vsel %vm464, 1, 0
        %v480 = vsel %vm465, 1, 0
        %v481 = vsel %vm466, 1, 0
        %v482 = vsel %vm467, 1, 0
        %v483 = vsel %vm468, 1, 0
        %v484 = vsel %vm469, 1, 0
        %v485 = vsel %vm470, 1, 0
        %v486 = vsel %vm471, 1, 0
        %v487 = vsel %vm472, 1, 0
        %v488 = vsel %vm473, 1, 0
        %v489 = vsel %vm474, 1, 0
        %v490 = vsel %vm475, 1, 0
        %v491 = vsel %vm476, 1, 0
        %v492 = vsel %vm477, 1, 0
        %v493 = vsel %vm478, 1, 0
        %494 = vset.pattern.permute.xlu0 0
        %495 = vperm.xlu0 %494, %v479
        %v496 = vpop.permute.xlu0 %495
        %v497 = vperm.slane %v496, 0
        %498 = vset.pattern.permute.xlu0 0
        %499 = vperm.xlu0 %498, %v480
        %v500 = vpop.permute.xlu0 %499
        %v501 = vperm.slane %v500, 0
        %502 = vset.pattern.permute.xlu0 0
        %503 = vperm.xlu0 %502, %v481
        %v504 = vpop.permute.xlu0 %503
        %v505 = vperm.slane %v504, 0
        %506 = vset.pattern.permute.xlu0 0
        %507 = vperm.xlu0 %506, %v482
        %v508 = vpop.permute.xlu0 %507
        %v509 = vperm.slane %v508, 0
        %510 = vset.pattern.permute.xlu0 0
        %511 = vperm.xlu0 %510, %v483
        %v512 = vpop.permute.xlu0 %511
        %v513 = vperm.slane %v512, 0
        %514 = vset.pattern.permute.xlu0 0
        %515 = vperm.xlu0 %514, %v484
        %v516 = vpop.permute.xlu0 %515
        %v517 = vperm.slane %v516, 0
        %518 = vset.pattern.permute.xlu0 0
        %519 = vperm.xlu0 %518, %v485
        %v520 = vpop.permute.xlu0 %519
        %v521 = vperm.slane %v520, 0
        %522 = vset.pattern.permute.xlu0 0
        %523 = vperm.xlu0 %522, %v486
        %v524 = vpop.permute.xlu0 %523
        %v525 = vperm.slane %v524, 0
        %526 = vset.pattern.permute.xlu0 0
        %527 = vperm.xlu0 %526, %v487
        %v528 = vpop.permute.xlu0 %527
        %v529 = vperm.slane %v528, 0
        %530 = vset.pattern.permute.xlu0 0
        %531 = vperm.xlu0 %530, %v488
        %v532 = vpop.permute.xlu0 %531
        %v533 = vperm.slane %v532, 0
        %534 = vset.pattern.permute.xlu0 0
        %535 = vperm.xlu0 %534, %v489
        %v536 = vpop.permute.xlu0 %535
        %v537 = vperm.slane %v536, 0
        %538 = vset.pattern.permute.xlu0 0
        %539 = vperm.xlu0 %538, %v490
        %v540 = vpop.permute.xlu0 %539
        %v541 = vperm.slane %v540, 0
        %542 = vset.pattern.permute.xlu0 0
        %543 = vperm.xlu0 %542, %v491
        %v544 = vpop.permute.xlu0 %543
        %v545 = vperm.slane %v544, 0
        %546 = vset.pattern.permute.xlu0 0
        %547 = vperm.xlu0 %546, %v492
        %v548 = vpop.permute.xlu0 %547
        %v549 = vperm.slane %v548, 0
        %550 = vset.pattern.permute.xlu0 0
        %551 = vperm.xlu0 %550, %v493
        %v552 = vpop.permute.xlu0 %551
        %v553 = vperm.slane %v552, 0
        %vm554 = vcmp.eq.s32.totalorder %v497, 1
        %vm555 = vcmp.eq.s32.totalorder %v501, 1
        %vm556 = vcmp.eq.s32.totalorder %v505, 1
        %vm557 = vcmp.eq.s32.totalorder %v509, 1
        %vm558 = vcmp.eq.s32.totalorder %v513, 1
        %vm559 = vcmp.eq.s32.totalorder %v517, 1
        %vm560 = vcmp.eq.s32.totalorder %v521, 1
        %vm561 = vcmp.eq.s32.totalorder %v525, 1
        %vm562 = vcmp.eq.s32.totalorder %v529, 1
        %vm563 = vcmp.eq.s32.totalorder %v533, 1
        %vm564 = vcmp.eq.s32.totalorder %v537, 1
        %vm565 = vcmp.eq.s32.totalorder %v541, 1
        %vm566 = vcmp.eq.s32.totalorder %v545, 1
        %vm567 = vcmp.eq.s32.totalorder %v549, 1
        %vm568 = vcmp.eq.s32.totalorder %v553, 1
        %v569 = vsel %vm554, %v209, -inf
        %v570 = vsel %vm554, %v210, -inf
        %v571 = vsel %vm554, %v211, -inf
        %v572 = vsel %vm554, %v212, -inf
        %v573 = vsel %vm554, %v213, -inf
        %v574 = vsel %vm554, %v214, -inf
        %v575 = vsel %vm554, %v215, -inf
        %v576 = vsel %vm554, %v216, -inf
        %v577 = vsel %vm554, %v217, -inf
        %v578 = vsel %vm554, %v218, -inf
        %v579 = vsel %vm554, %v219, -inf
        %v580 = vsel %vm554, %v220, -inf
        %v581 = vsel %vm554, %v221, -inf
        %v582 = vsel %vm554, %v222, -inf
        %v583 = vsel %vm554, %v223, -inf
        %v584 = vsel %vm554, %v224, -inf
        %v585 = vsel %vm555, %v225, -inf
        %v586 = vsel %vm555, %v226, -inf
        %v587 = vsel %vm555, %v227, -inf
        %v588 = vsel %vm555, %v228, -inf
        %v589 = vsel %vm555, %v229, -inf
        %v590 = vsel %vm555, %v230, -inf
        %v591 = vsel %vm555, %v231, -inf
        %v592 = vsel %vm555, %v232, -inf
        %v593 = vsel %vm555, %v233, -inf
        %v594 = vsel %vm555, %v234, -inf
        %v595 = vsel %vm555, %v235, -inf
        %v596 = vsel %vm555, %v236, -inf
        %v597 = vsel %vm555, %v237, -inf
        %v598 = vsel %vm555, %v238, -inf
        %v599 = vsel %vm555, %v239, -inf
        %v600 = vsel %vm555, %v240, -inf
        %v601 = vsel %vm556, %v241, -inf
        %v602 = vsel %vm556, %v242, -inf
        %v603 = vsel %vm556, %v243, -inf
        %v604 = vsel %vm556, %v244, -inf
        %v605 = vsel %vm556, %v245, -inf
        %v606 = vsel %vm556, %v246, -inf
        %v607 = vsel %vm556, %v247, -inf
        %v608 = vsel %vm556, %v248, -inf
        %v609 = vsel %vm556, %v249, -inf
        %v610 = vsel %vm556, %v250, -inf
        %v611 = vsel %vm556, %v251, -inf
        %v612 = vsel %vm556, %v252, -inf
        %v613 = vsel %vm556, %v253, -inf
        %v614 = vsel %vm556, %v254, -inf
        %v615 = vsel %vm556, %v255, -inf
        %v616 = vsel %vm556, %v256, -inf
        %v617 = vsel %vm557, %v257, -inf
        %v618 = vsel %vm557, %v258, -inf
        %v619 = vsel %vm557, %v259, -inf
        %v620 = vsel %vm557, %v260, -inf
        %v621 = vsel %vm557, %v261, -inf
        %v622 = vsel %vm557, %v262, -inf
        %v623 = vsel %vm557, %v263, -inf
        %v624 = vsel %vm557, %v264, -inf
        %v625 = vsel %vm557, %v265, -inf
        %v626 = vsel %vm557, %v266, -inf
        %v627 = vsel %vm557, %v267, -inf
        %v628 = vsel %vm557, %v268, -inf
        %v629 = vsel %vm557, %v269, -inf
        %v630 = vsel %vm557, %v270, -inf
        %v631 = vsel %vm557, %v271, -inf
        %v632 = vsel %vm557, %v272, -inf
        %v633 = vsel %vm558, %v273, -inf
        %v634 = vsel %vm558, %v274, -inf
        %v635 = vsel %vm558, %v275, -inf
        %v636 = vsel %vm558, %v276, -inf
        %v637 = vsel %vm558, %v277, -inf
        %v638 = vsel %vm558, %v278, -inf
        %v639 = vsel %vm558, %v279, -inf
        %v640 = vsel %vm558, %v280, -inf
        %v641 = vsel %vm558, %v281, -inf
        %v642 = vsel %vm558, %v282, -inf
        %v643 = vsel %vm558, %v283, -inf
        %v644 = vsel %vm558, %v284, -inf
        %v645 = vsel %vm558, %v285, -inf
        %v646 = vsel %vm558, %v286, -inf
        %v647 = vsel %vm558, %v287, -inf
        %v648 = vsel %vm558, %v288, -inf
        %v649 = vsel %vm559, %v289, -inf
        %v650 = vsel %vm559, %v290, -inf
        %v651 = vsel %vm559, %v291, -inf
        %v652 = vsel %vm559, %v292, -inf
        %v653 = vsel %vm559, %v293, -inf
        %v654 = vsel %vm559, %v294, -inf
        %v655 = vsel %vm559, %v295, -inf
        %v656 = vsel %vm559, %v296, -inf
        %v657 = vsel %vm559, %v297, -inf
        %v658 = vsel %vm559, %v298, -inf
        %v659 = vsel %vm559, %v299, -inf
        %v660 = vsel %vm559, %v300, -inf
        %v661 = vsel %vm559, %v301, -inf
        %v662 = vsel %vm559, %v302, -inf
        %v663 = vsel %vm559, %v303, -inf
        %v664 = vsel %vm559, %v304, -inf
        %v665 = vsel %vm560, %v305, -inf
        %v666 = vsel %vm560, %v306, -inf
        %v667 = vsel %vm560, %v307, -inf
        %v668 = vsel %vm560, %v308, -inf
        %v669 = vsel %vm560, %v309, -inf
        %v670 = vsel %vm560, %v310, -inf
        %v671 = vsel %vm560, %v311, -inf
        %v672 = vsel %vm560, %v312, -inf
        %v673 = vsel %vm560, %v313, -inf
        %v674 = vsel %vm560, %v314, -inf
        %v675 = vsel %vm560, %v315, -inf
        %v676 = vsel %vm560, %v316, -inf
        %v677 = vsel %vm560, %v317, -inf
        %v678 = vsel %vm560, %v318, -inf
        %v679 = vsel %vm560, %v319, -inf
        %v680 = vsel %vm560, %v320, -inf
        %v681 = vsel %vm561, %v321, -inf
        %v682 = vsel %vm561, %v322, -inf
        %v683 = vsel %vm561, %v323, -inf
        %v684 = vsel %vm561, %v324, -inf
        %v685 = vsel %vm561, %v325, -inf
        %v686 = vsel %vm561, %v326, -inf
        %v687 = vsel %vm561, %v327, -inf
        %v688 = vsel %vm561, %v328, -inf
        %v689 = vsel %vm561, %v329, -inf
        %v690 = vsel %vm561, %v330, -inf
        %v691 = vsel %vm561, %v331, -inf
        %v692 = vsel %vm561, %v332, -inf
        %v693 = vsel %vm561, %v333, -inf
        %v694 = vsel %vm561, %v334, -inf
        %v695 = vsel %vm561, %v335, -inf
        %v696 = vsel %vm561, %v336, -inf
        %v697 = vsel %vm562, %v337, -inf
        %v698 = vsel %vm562, %v338, -inf
        %v699 = vsel %vm562, %v339, -inf
        %v700 = vsel %vm562, %v340, -inf
        %v701 = vsel %vm562, %v341, -inf
        %v702 = vsel %vm562, %v342, -inf
        %v703 = vsel %vm562, %v343, -inf
        %v704 = vsel %vm562, %v344, -inf
        %v705 = vsel %vm562, %v345, -inf
        %v706 = vsel %vm562, %v346, -inf
        %v707 = vsel %vm562, %v347, -inf
        %v708 = vsel %vm562, %v348, -inf
        %v709 = vsel %vm562, %v349, -inf
        %v710 = vsel %vm562, %v350, -inf
        %v711 = vsel %vm562, %v351, -inf
        %v712 = vsel %vm562, %v352, -inf
        %v713 = vsel %vm563, %v353, -inf
        %v714 = vsel %vm563, %v354, -inf
        %v715 = vsel %vm563, %v355, -inf
        %v716 = vsel %vm563, %v356, -inf
        %v717 = vsel %vm563, %v357, -inf
        %v718 = vsel %vm563, %v358, -inf
        %v719 = vsel %vm563, %v359, -inf
        %v720 = vsel %vm563, %v360, -inf
        %v721 = vsel %vm563, %v361, -inf
        %v722 = vsel %vm563, %v362, -inf
        %v723 = vsel %vm563, %v363, -inf
        %v724 = vsel %vm563, %v364, -inf
        %v725 = vsel %vm563, %v365, -inf
        %v726 = vsel %vm563, %v366, -inf
        %v727 = vsel %vm563, %v367, -inf
        %v728 = vsel %vm563, %v368, -inf
        %v729 = vsel %vm564, %v369, -inf
        %v730 = vsel %vm564, %v370, -inf
        %v731 = vsel %vm564, %v371, -inf
        %v732 = vsel %vm564, %v372, -inf
        %v733 = vsel %vm564, %v373, -inf
        %v734 = vsel %vm564, %v374, -inf
        %v735 = vsel %vm564, %v375, -inf
        %v736 = vsel %vm564, %v376, -inf
        %v737 = vsel %vm564, %v377, -inf
        %v738 = vsel %vm564, %v378, -inf
        %v739 = vsel %vm564, %v379, -inf
        %v740 = vsel %vm564, %v380, -inf
        %v741 = vsel %vm564, %v381, -inf
        %v742 = vsel %vm564, %v382, -inf
        %v743 = vsel %vm564, %v383, -inf
        %v744 = vsel %vm564, %v384, -inf
        %v745 = vsel %vm565, %v385, -inf
        %v746 = vsel %vm565, %v386, -inf
        %v747 = vsel %vm565, %v387, -inf
        %v748 = vsel %vm565, %v388, -inf
        %v749 = vsel %vm565, %v389, -inf
        %v750 = vsel %vm565, %v390, -inf
        %v751 = vsel %vm565, %v391, -inf
        %v752 = vsel %vm565, %v392, -inf
        %v753 = vsel %vm565, %v393, -inf
        %v754 = vsel %vm565, %v394, -inf
        %v755 = vsel %vm565, %v395, -inf
        %v756 = vsel %vm565, %v396, -inf
        %v757 = vsel %vm565, %v397, -inf
        %v758 = vsel %vm565, %v398, -inf
        %v759 = vsel %vm565, %v399, -inf
        %v760 = vsel %vm565, %v400, -inf
        %v761 = vsel %vm566, %v401, -inf
        %v762 = vsel %vm566, %v402, -inf
        %v763 = vsel %vm566, %v403, -inf
        %v764 = vsel %vm566, %v404, -inf
        %v765 = vsel %vm566, %v405, -inf
        %v766 = vsel %vm566, %v406, -inf
        %v767 = vsel %vm566, %v407, -inf
        %v768 = vsel %vm566, %v408, -inf
        %v769 = vsel %vm566, %v409, -inf
        %v770 = vsel %vm566, %v410, -inf
        %v771 = vsel %vm566, %v411, -inf
        %v772 = vsel %vm566, %v412, -inf
        %v773 = vsel %vm566, %v413, -inf
        %v774 = vsel %vm566, %v414, -inf
        %v775 = vsel %vm566, %v415, -inf
        %v776 = vsel %vm566, %v416, -inf
        %v777 = vsel %vm567, %v417, -inf
        %v778 = vsel %vm567, %v418, -inf
        %v779 = vsel %vm567, %v419, -inf
        %v780 = vsel %vm567, %v420, -inf
        %v781 = vsel %vm567, %v421, -inf
        %v782 = vsel %vm567, %v422, -inf
        %v783 = vsel %vm567, %v423, -inf
        %v784 = vsel %vm567, %v424, -inf
        %v785 = vsel %vm567, %v425, -inf
        %v786 = vsel %vm567, %v426, -inf
        %v787 = vsel %vm567, %v427, -inf
        %v788 = vsel %vm567, %v428, -inf
        %v789 = vsel %vm567, %v429, -inf
        %v790 = vsel %vm567, %v430, -inf
        %v791 = vsel %vm567, %v431, -inf
        %v792 = vsel %vm567, %v432, -inf
        %v793 = vsel %vm568, %v433, -inf
        %v794 = vsel %vm568, %v434, -inf
        %v795 = vsel %vm568, %v435, -inf
        %v796 = vsel %vm568, %v436, -inf
        %v797 = vsel %vm568, %v437, -inf
        %v798 = vsel %vm568, %v438, -inf
        %v799 = vsel %vm568, %v439, -inf
        %v800 = vsel %vm568, %v440, -inf
        %v801 = vsel %vm568, %v441, -inf
        %v802 = vsel %vm568, %v442, -inf
        %v803 = vsel %vm568, %v443, -inf
        %v804 = vsel %vm568, %v444, -inf
        %v805 = vsel %vm568, %v445, -inf
        %v806 = vsel %vm568, %v446, -inf
        %v807 = vsel %vm568, %v447, -inf
        %v808 = vsel %vm568, %v448, -inf
        %v809 = vmax.f32 %v569, %v585
        %v810 = vmax.f32 %v570, %v586
        %v811 = vmax.f32 %v571, %v587
        %v812 = vmax.f32 %v572, %v588
        %v813 = vmax.f32 %v573, %v589
        %v814 = vmax.f32 %v574, %v590
        %v815 = vmax.f32 %v575, %v591
        %v816 = vmax.f32 %v576, %v592
        %v817 = vmax.f32 %v577, %v593
        %v818 = vmax.f32 %v578, %v594
        %v819 = vmax.f32 %v579, %v595
        %v820 = vmax.f32 %v580, %v596
        %v821 = vmax.f32 %v581, %v597
        %v822 = vmax.f32 %v582, %v598
        %v823 = vmax.f32 %v583, %v599
        %v824 = vmax.f32 %v584, %v600
        %v825 = vmax.f32 %v617, %v633
        %v826 = vmax.f32 %v618, %v634
        %v827 = vmax.f32 %v619, %v635
        %v828 = vmax.f32 %v620, %v636
        %v829 = vmax.f32 %v621, %v637
        %v830 = vmax.f32 %v622, %v638
        %v831 = vmax.f32 %v623, %v639
        %v832 = vmax.f32 %v624, %v640
        %v833 = vmax.f32 %v625, %v641
        %v834 = vmax.f32 %v626, %v642
        %v835 = vmax.f32 %v627, %v643
        %v836 = vmax.f32 %v628, %v644
        %v837 = vmax.f32 %v629, %v645
        %v838 = vmax.f32 %v630, %v646
        %v839 = vmax.f32 %v631, %v647
        %v840 = vmax.f32 %v632, %v648
        %v841 = vmax.f32 %v665, %v681
        %v842 = vmax.f32 %v666, %v682
        %v843 = vmax.f32 %v667, %v683
        %v844 = vmax.f32 %v668, %v684
        %v845 = vmax.f32 %v669, %v685
        %v846 = vmax.f32 %v670, %v686
        %v847 = vmax.f32 %v671, %v687
        %v848 = vmax.f32 %v672, %v688
        %v849 = vmax.f32 %v673, %v689
        %v850 = vmax.f32 %v674, %v690
        %v851 = vmax.f32 %v675, %v691
        %v852 = vmax.f32 %v676, %v692
        %v853 = vmax.f32 %v677, %v693
        %v854 = vmax.f32 %v678, %v694
        %v855 = vmax.f32 %v679, %v695
        %v856 = vmax.f32 %v680, %v696
        %v857 = vmax.f32 %v713, %v729
        %v858 = vmax.f32 %v714, %v730
        %v859 = vmax.f32 %v715, %v731
        %v860 = vmax.f32 %v716, %v732
        %v861 = vmax.f32 %v717, %v733
        %v862 = vmax.f32 %v718, %v734
        %v863 = vmax.f32 %v719, %v735
        %v864 = vmax.f32 %v720, %v736
        %v865 = vmax.f32 %v721, %v737
        %v866 = vmax.f32 %v722, %v738
        %v867 = vmax.f32 %v723, %v739
        %v868 = vmax.f32 %v724, %v740
        %v869 = vmax.f32 %v725, %v741
        %v870 = vmax.f32 %v726, %v742
        %v871 = vmax.f32 %v727, %v743
        %v872 = vmax.f32 %v728, %v744
        %v873 = vmax.f32 %v761, %v777
        %v874 = vmax.f32 %v762, %v778
        %v875 = vmax.f32 %v763, %v779
        %v876 = vmax.f32 %v764, %v780
        %v877 = vmax.f32 %v765, %v781
        %v878 = vmax.f32 %v766, %v782
        %v879 = vmax.f32 %v767, %v783
        %v880 = vmax.f32 %v768, %v784
        %v881 = vmax.f32 %v769, %v785
        %v882 = vmax.f32 %v770, %v786
        %v883 = vmax.f32 %v771, %v787
        %v884 = vmax.f32 %v772, %v788
        %v885 = vmax.f32 %v773, %v789
        %v886 = vmax.f32 %v774, %v790
        %v887 = vmax.f32 %v775, %v791
        %v888 = vmax.f32 %v776, %v792
        %v889 = vmax.f32 %v809, %v601
        %v890 = vmax.f32 %v810, %v602
        %v891 = vmax.f32 %v811, %v603
        %v892 = vmax.f32 %v812, %v604
        %v893 = vmax.f32 %v813, %v605
        %v894 = vmax.f32 %v814, %v606
        %v895 = vmax.f32 %v815, %v607
        %v896 = vmax.f32 %v816, %v608
        %v897 = vmax.f32 %v817, %v609
        %v898 = vmax.f32 %v818, %v610
        %v899 = vmax.f32 %v819, %v611
        %v900 = vmax.f32 %v820, %v612
        %v901 = vmax.f32 %v821, %v613
        %v902 = vmax.f32 %v822, %v614
        %v903 = vmax.f32 %v823, %v615
        %v904 = vmax.f32 %v824, %v616
        %v905 = vmax.f32 %v825, %v649
        %v906 = vmax.f32 %v826, %v650
        %v907 = vmax.f32 %v827, %v651
        %v908 = vmax.f32 %v828, %v652
        %v909 = vmax.f32 %v829, %v653
        %v910 = vmax.f32 %v830, %v654
        %v911 = vmax.f32 %v831, %v655
        %v912 = vmax.f32 %v832, %v656
        %v913 = vmax.f32 %v833, %v657
        %v914 = vmax.f32 %v834, %v658
        %v915 = vmax.f32 %v835, %v659
        %v916 = vmax.f32 %v836, %v660
        %v917 = vmax.f32 %v837, %v661
        %v918 = vmax.f32 %v838, %v662
        %v919 = vmax.f32 %v839, %v663
        %v920 = vmax.f32 %v840, %v664
        %v921 = vmax.f32 %v841, %v697
        %v922 = vmax.f32 %v842, %v698
        %v923 = vmax.f32 %v843, %v699
        %v924 = vmax.f32 %v844, %v700
        %v925 = vmax.f32 %v845, %v701
        %v926 = vmax.f32 %v846, %v702
        %v927 = vmax.f32 %v847, %v703
        %v928 = vmax.f32 %v848, %v704
        %v929 = vmax.f32 %v849, %v705
        %v930 = vmax.f32 %v850, %v706
        %v931 = vmax.f32 %v851, %v707
        %v932 = vmax.f32 %v852, %v708
        %v933 = vmax.f32 %v853, %v709
        %v934 = vmax.f32 %v854, %v710
        %v935 = vmax.f32 %v855, %v711
        %v936 = vmax.f32 %v856, %v712
        %v937 = vmax.f32 %v857, %v745
        %v938 = vmax.f32 %v858, %v746
        %v939 = vmax.f32 %v859, %v747
        %v940 = vmax.f32 %v860, %v748
        %v941 = vmax.f32 %v861, %v749
        %v942 = vmax.f32 %v862, %v750
        %v943 = vmax.f32 %v863, %v751
        %v944 = vmax.f32 %v864, %v752
        %v945 = vmax.f32 %v865, %v753
        %v946 = vmax.f32 %v866, %v754
        %v947 = vmax.f32 %v867, %v755
        %v948 = vmax.f32 %v868, %v756
        %v949 = vmax.f32 %v869, %v757
        %v950 = vmax.f32 %v870, %v758
        %v951 = vmax.f32 %v871, %v759
        %v952 = vmax.f32 %v872, %v760
        %v953 = vmax.f32 %v873, %v793
        %v954 = vmax.f32 %v874, %v794
        %v955 = vmax.f32 %v875, %v795
        %v956 = vmax.f32 %v876, %v796
        %v957 = vmax.f32 %v877, %v797
        %v958 = vmax.f32 %v878, %v798
        %v959 = vmax.f32 %v879, %v799
        %v960 = vmax.f32 %v880, %v800
        %v961 = vmax.f32 %v881, %v801
        %v962 = vmax.f32 %v882, %v802
        %v963 = vmax.f32 %v883, %v803
        %v964 = vmax.f32 %v884, %v804
        %v965 = vmax.f32 %v885, %v805
        %v966 = vmax.f32 %v886, %v806
        %v967 = vmax.f32 %v887, %v807
        %v968 = vmax.f32 %v888, %v808
        %v969 = vmax.f32 %v889, %v890
        %v970 = vmax.f32 %v892, %v893
        %v971 = vmax.f32 %v895, %v896
        %v972 = vmax.f32 %v898, %v899
        %v973 = vmax.f32 %v901, %v902
        %v974 = vmax.f32 %v905, %v906
        %v975 = vmax.f32 %v908, %v909
        %v976 = vmax.f32 %v911, %v912
        %v977 = vmax.f32 %v914, %v915
        %v978 = vmax.f32 %v917, %v918
        %v979 = vmax.f32 %v921, %v922
        %v980 = vmax.f32 %v924, %v925
        %v981 = vmax.f32 %v927, %v928
        %v982 = vmax.f32 %v930, %v931
        %v983 = vmax.f32 %v933, %v934
        %v984 = vmax.f32 %v937, %v938
        %v985 = vmax.f32 %v940, %v941
        %v986 = vmax.f32 %v943, %v944
        %v987 = vmax.f32 %v946, %v947
        %v988 = vmax.f32 %v949, %v950
        %v989 = vmax.f32 %v953, %v954
        %v990 = vmax.f32 %v956, %v957
        %v991 = vmax.f32 %v959, %v960
        %v992 = vmax.f32 %v962, %v963
        %v993 = vmax.f32 %v965, %v966
        %v994 = vmax.f32 %v969, %v891
        %v995 = vmax.f32 %v970, %v894
        %v996 = vmax.f32 %v971, %v897
        %v997 = vmax.f32 %v972, %v900
        %v998 = vmax.f32 %v973, %v903
        %v999 = vmax.f32 %v974, %v907
        %v1000 = vmax.f32 %v975, %v910
        %v1001 = vmax.f32 %v976, %v913
        %v1002 = vmax.f32 %v977, %v916
        %v1003 = vmax.f32 %v978, %v919
        %v1004 = vmax.f32 %v979, %v923
        %v1005 = vmax.f32 %v980, %v926
        %v1006 = vmax.f32 %v981, %v929
        %v1007 = vmax.f32 %v982, %v932
        %v1008 = vmax.f32 %v983, %v935
        %v1009 = vmax.f32 %v984, %v939
        %v1010 = vmax.f32 %v985, %v942
        %v1011 = vmax.f32 %v986, %v945
        %v1012 = vmax.f32 %v987, %v948
        %v1013 = vmax.f32 %v988, %v951
        %v1014 = vmax.f32 %v989, %v955
        %v1015 = vmax.f32 %v990, %v958
        %v1016 = vmax.f32 %v991, %v961
        %v1017 = vmax.f32 %v992, %v964
        %v1018 = vmax.f32 %v993, %v967
        %vm1019 = vcmask 57344
        %1020 = vst.msk [vmem:[%s181] sm:$0x1] %vm1019, %v994
        %1021 = vst.msk [vmem:[%s181 + $0x1] sm:$0x1] %vm1019, %v995
        %1022 = vst.msk [vmem:[%s181 + $0x2] sm:$0x1] %vm1019, %v996
        %1023 = vst.msk [vmem:[%s181 + $0x3] sm:$0x1] %vm1019, %v997
        %1024 = vst.msk [vmem:[%s181 + $0x4] sm:$0x1] %vm1019, %v998
        %1025 = vst.msk [vmem:[%s181 + $0x5] sm:$0x1] %vm1019, %v904
        %1026 = vst.msk [vmem:[%s181 + $0x6] sm:$0x1] %vm1019, %v999
        %1027 = vst.msk [vmem:[%s181 + $0x7] sm:$0x1] %vm1019, %v1000
        %1028 = vst.msk [vmem:[%s181 + $0x8] sm:$0x1] %vm1019, %v1001
        %1029 = vst.msk [vmem:[%s181 + $0x9] sm:$0x1] %vm1019, %v1002
        %1030 = vst.msk [vmem:[%s181 + $0xa] sm:$0x1] %vm1019, %v1003
        %1031 = vst.msk [vmem:[%s181 + $0xb] sm:$0x1] %vm1019, %v920
        %1032 = vst.msk [vmem:[%s181 + $0xc] sm:$0x1] %vm1019, %v1004
        %1033 = vst.msk [vmem:[%s181 + $0xd] sm:$0x1] %vm1019, %v1005
        %1034 = vst.msk [vmem:[%s181 + $0xe] sm:$0x1] %vm1019, %v1006
        %1035 = vst.msk [vmem:[%s181 + $0xf] sm:$0x1] %vm1019, %v1007
        %1036 = vst.msk [vmem:[%s181 + $0x10] sm:$0x1] %vm1019, %v1008
        %1037 = vst.msk [vmem:[%s181 + $0x11] sm:$0x1] %vm1019, %v936
        %1038 = vst.msk [vmem:[%s181 + $0x12] sm:$0x1] %vm1019, %v1009
        %1039 = vst.msk [vmem:[%s181 + $0x13] sm:$0x1] %vm1019, %v1010
        %1040 = vst.msk [vmem:[%s181 + $0x14] sm:$0x1] %vm1019, %v1011
        %1041 = vst.msk [vmem:[%s181 + $0x15] sm:$0x1] %vm1019, %v1012
        %1042 = vst.msk [vmem:[%s181 + $0x16] sm:$0x1] %vm1019, %v1013
        %1043 = vst.msk [vmem:[%s181 + $0x17] sm:$0x1] %vm1019, %v952
        %1044 = vst.msk [vmem:[%s181 + $0x18] sm:$0x1] %vm1019, %v1014
        %1045 = vst.msk [vmem:[%s181 + $0x19] sm:$0x1] %vm1019, %v1015
        %1046 = vst.msk [vmem:[%s181 + $0x1a] sm:$0x1] %vm1019, %v1016
        %1047 = vst.msk [vmem:[%s181 + $0x1b] sm:$0x1] %vm1019, %v1017
        %1048 = vst.msk [vmem:[%s181 + $0x1c] sm:$0x1] %vm1019, %v1018
        %1049 = vst.msk [vmem:[%s181 + $0x1d] sm:$0x1] %vm1019, %v968
        %s1050 = sand.u32 %s89, 1
        %s1051 = sand.u32 %s89, 1
        %s1052 = smul.addr %s1051, 30
        %s1053 = scalar_lea.vmem [#allocation2], %s1052
        // Predicated region
        $region29: #{maxpool2d_ceil.1} parent=27 // pred_check
          %p1054 = pneg %p99
        $region30: #{maxpool2d_ceil.1} parent=27 // pred_check_branch
          %1056 = sbr.rel (%p1054) target = $region32
        $region31: #{maxpool2d_ceil.1} parent=27 // pred_region
          %s1057 = smul.u32 5, %s18
          %s1058 = ssub.s32 6, %s1057
          %p1059 = scmp.lt.s32.totalorder %s1058, 5
          %s1060 = scalar_select %p1059, %s1058, 5
          %s1061 = smul.u32 %s1060, 6
          %p1062 = scmp.ne.s32.totalorder 0, %s1061
          %s1063 = smul.addr %s1057, 6
          %s1064 = sadd.s32 %s17, %s1063
          %s1065 = scalar_lea.vmem %s2, %s1064
          %s1066 = smul.u32 %s1060, 6
          // Predicated region
          $region33: #{maxpool2d_ceil.1} parent=31 // pred_check
            %p1067 = pneg %p1062
          $region34: #{maxpool2d_ceil.1} parent=31 // pred_check_branch
            %1069 = sbr.rel (%p1067) target = $region36
          $region35: #{maxpool2d_ceil.1} parent=31 // pred_region
            %p1070 = scmp.lt.u32.totalorder %s1066, 8
            %p1071 = pneg %p1070
            // Predicated region
            $region37: #{maxpool2d_ceil.1} parent=35 // pred_check
              _
            $region38: #{maxpool2d_ceil.1} parent=35 // pred_check_branch
              %1073 = sbr.rel (%p1070) target = $region40
            $region39: #{maxpool2d_ceil.1} parent=35 // pred_region
              %s1089 = sand.u32 %s1066, 7
              %p1090 = scmp.eq.s32.totalorder %s1089, 0
              // Predicated region
              $region52: #{maxpool2d_ceil.1} parent=39 // pred_check
                %p1091 = pneg %p1090
              $region53: #{maxpool2d_ceil.1} parent=39 // pred_check_branch
                %1093 = sbr.rel (%p1091) target = $region55
              $region54: #{maxpool2d_ceil.1} parent=39 // pred_region
                %s1094 = sshrl.u32 %s1066, 3
                %s1095 = sshrl.u32 %s1094, 5
                // While loop
                $region56: #{maxpool2d_ceil.1} parent=54 // loop_pre_header
                  _
                $region57: #{maxpool2d_ceil.1} parent=54 // loop_header
                  %s1097 = sphi 0, %s1099
                  %p1098 = scmp.ge.s32.totalorder %s1097, %s1095
                  %s1102 = sphi 0, %s1171
                  %s1103 = sphi %s1053, %s1174
                  %s1104 = sphi %s1065, %s1175
                $region58: #{maxpool2d_ceil.1} parent=54 // loop_header_branch
                  %1101 = sbr.rel (%p1098) target = $region62
                $region59: #{maxpool2d_ceil.1} parent=54 // loop_body
                  %v1105 = vld [vmem:[%s1103] sm:$0xff]
                  %1106 = vst [vmem:[%s1104] sm:$0xff] %v1105
                  %v1107 = vld [vmem:[%s1103 + $0x8] sm:$0xff]
                  %1108 = vst [vmem:[%s1104 + $0x8] sm:$0xff] %v1107
                  %v1109 = vld [vmem:[%s1103 + $0x10] sm:$0xff]
                  %1110 = vst [vmem:[%s1104 + $0x10] sm:$0xff] %v1109
                  %v1111 = vld [vmem:[%s1103 + $0x18] sm:$0xff]
                  %1112 = vst [vmem:[%s1104 + $0x18] sm:$0xff] %v1111
                  %v1113 = vld [vmem:[%s1103 + $0x20] sm:$0xff]
                  %1114 = vst [vmem:[%s1104 + $0x20] sm:$0xff] %v1113
                  %v1115 = vld [vmem:[%s1103 + $0x28] sm:$0xff]
                  %1116 = vst [vmem:[%s1104 + $0x28] sm:$0xff] %v1115
                  %v1117 = vld [vmem:[%s1103 + $0x30] sm:$0xff]
                  %1118 = vst [vmem:[%s1104 + $0x30] sm:$0xff] %v1117
                  %v1119 = vld [vmem:[%s1103 + $0x38] sm:$0xff]
                  %1120 = vst [vmem:[%s1104 + $0x38] sm:$0xff] %v1119
                  %v1121 = vld [vmem:[%s1103 + $0x40] sm:$0xff]
                  %1122 = vst [vmem:[%s1104 + $0x40] sm:$0xff] %v1121
                  %v1123 = vld [vmem:[%s1103 + $0x48] sm:$0xff]
                  %1124 = vst [vmem:[%s1104 + $0x48] sm:$0xff] %v1123
                  %v1125 = vld [vmem:[%s1103 + $0x50] sm:$0xff]
                  %1126 = vst [vmem:[%s1104 + $0x50] sm:$0xff] %v1125
                  %v1127 = vld [vmem:[%s1103 + $0x58] sm:$0xff]
                  %1128 = vst [vmem:[%s1104 + $0x58] sm:$0xff] %v1127
                  %v1129 = vld [vmem:[%s1103 + $0x60] sm:$0xff]
                  %1130 = vst [vmem:[%s1104 + $0x60] sm:$0xff] %v1129
                  %v1131 = vld [vmem:[%s1103 + $0x68] sm:$0xff]
                  %1132 = vst [vmem:[%s1104 + $0x68] sm:$0xff] %v1131
                  %v1133 = vld [vmem:[%s1103 + $0x70] sm:$0xff]
                  %1134 = vst [vmem:[%s1104 + $0x70] sm:$0xff] %v1133
                  %v1135 = vld [vmem:[%s1103 + $0x78] sm:$0xff]
                  %1136 = vst [vmem:[%s1104 + $0x78] sm:$0xff] %v1135
                  %v1137 = vld [vmem:[%s1103 + $0x80] sm:$0xff]
                  %1138 = vst [vmem:[%s1104 + $0x80] sm:$0xff] %v1137
                  %v1139 = vld [vmem:[%s1103 + $0x88] sm:$0xff]
                  %1140 = vst [vmem:[%s1104 + $0x88] sm:$0xff] %v1139
                  %v1141 = vld [vmem:[%s1103 + $0x90] sm:$0xff]
                  %1142 = vst [vmem:[%s1104 + $0x90] sm:$0xff] %v1141
                  %v1143 = vld [vmem:[%s1103 + $0x98] sm:$0xff]
                  %1144 = vst [vmem:[%s1104 + $0x98] sm:$0xff] %v1143
                  %v1145 = vld [vmem:[%s1103 + $0xa0] sm:$0xff]
                  %1146 = vst [vmem:[%s1104 + $0xa0] sm:$0xff] %v1145
                  %v1147 = vld [vmem:[%s1103 + $0xa8] sm:$0xff]
                  %1148 = vst [vmem:[%s1104 + $0xa8] sm:$0xff] %v1147
                  %v1149 = vld [vmem:[%s1103 + $0xb0] sm:$0xff]
                  %1150 = vst [vmem:[%s1104 + $0xb0] sm:$0xff] %v1149
                  %v1151 = vld [vmem:[%s1103 + $0xb8] sm:$0xff]
                  %1152 = vst [vmem:[%s1104 + $0xb8] sm:$0xff] %v1151
                  %v1153 = vld [vmem:[%s1103 + $0xc0] sm:$0xff]
                  %1154 = vst [vmem:[%s1104 + $0xc0] sm:$0xff] %v1153
                  %v1155 = vld [vmem:[%s1103 + $0xc8] sm:$0xff]
                  %1156 = vst [vmem:[%s1104 + $0xc8] sm:$0xff] %v1155
                  %v1157 = vld [vmem:[%s1103 + $0xd0] sm:$0xff]
                  %1158 = vst [vmem:[%s1104 + $0xd0] sm:$0xff] %v1157
                  %v1159 = vld [vmem:[%s1103 + $0xd8] sm:$0xff]
                  %1160 = vst [vmem:[%s1104 + $0xd8] sm:$0xff] %v1159
                  %v1161 = vld [vmem:[%s1103 + $0xe0] sm:$0xff]
                  %1162 = vst [vmem:[%s1104 + $0xe0] sm:$0xff] %v1161
                  %v1163 = vld [vmem:[%s1103 + $0xe8] sm:$0xff]
                  %1164 = vst [vmem:[%s1104 + $0xe8] sm:$0xff] %v1163
                  %v1165 = vld [vmem:[%s1103 + $0xf0] sm:$0xff]
                  %1166 = vst [vmem:[%s1104 + $0xf0] sm:$0xff] %v1165
                  %v1167 = vld [vmem:[%s1103 + $0xf8] sm:$0xff]
                  %1168 = vst [vmem:[%s1104 + $0xf8] sm:$0xff] %v1167
                  %s1169 = sadd.s32 1, %s1102
                  %p1170 = scmp.ge.s32.totalorder %s1169, %s1095
                  %s1171 = scalar_select %p1170, 0, %s1169
                  %s1172 = smul.u32 %s1171, 256
                  %s1173 = smul.u32 %s1171, 256
                  %s1174 = scalar_lea.vmem %s1053, %s1172 [#allocation2]
                  %s1175 = scalar_lea.vmem %s1065, %s1173
                $region60: #{maxpool2d_ceil.1} parent=54 // loop_footer
                  %s1099 = sadd.s32 %s1097, 1
                $region61: #{maxpool2d_ceil.1} parent=54 // loop_footer_branch
                  %1096 = sbr.rel target = $region57
                $region62: #{maxpool2d_ceil.1} parent=54 // loop_exit
                  _
                %s1176 = sshrl.u32 %s1094, 5
                %s1177 = sand.u32 %s1094, 31
                %s1178 = smul.u32 %s1176, 32
                %s1179 = smul.u32 8, %s1178
                %s1180 = scalar_lea.vmem %s1053, %s1179 [#allocation2]
                %s1181 = smul.u32 8, %s1178
                %s1182 = scalar_lea.vmem %s1065, %s1181
                // While loop
                $region63: #{maxpool2d_ceil.1} parent=54 // loop_pre_header
                  _
                $region64: #{maxpool2d_ceil.1} parent=54 // loop_header
                  %s1184 = sphi 0, %s1186
                  %p1185 = scmp.ge.s32.totalorder %s1184, %s1177
                  %s1189 = sphi 0, %s1196
                  %s1190 = sphi %s1180, %s1199
                  %s1191 = sphi %s1182, %s1200
                $region65: #{maxpool2d_ceil.1} parent=54 // loop_header_branch
                  %1188 = sbr.rel (%p1185) target = $region69
                $region66: #{maxpool2d_ceil.1} parent=54 // loop_body
                  %v1192 = vld [vmem:[%s1190] sm:$0xff]
                  %1193 = vst [vmem:[%s1191] sm:$0xff] %v1192
                  %s1194 = sadd.s32 1, %s1189
                  %p1195 = scmp.ge.s32.totalorder %s1194, %s1177
                  %s1196 = scalar_select %p1195, 0, %s1194
                  %s1197 = smul.u32 %s1196, 8
                  %s1198 = smul.u32 %s1196, 8
                  %s1199 = scalar_lea.vmem %s1180, %s1197 [#allocation2]
                  %s1200 = scalar_lea.vmem %s1182, %s1198
                $region67: #{maxpool2d_ceil.1} parent=54 // loop_footer
                  %s1186 = sadd.s32 %s1184, 1
                $region68: #{maxpool2d_ceil.1} parent=54 // loop_footer_branch
                  %1183 = sbr.rel target = $region64
                $region69: #{maxpool2d_ceil.1} parent=54 // loop_exit
                  _
              $region55: #{maxpool2d_ceil.1} parent=39 // pred_fallthru
                _
              %p1201 = pneg %p1090
              // Predicated region
              $region70: #{maxpool2d_ceil.1} parent=39 // pred_check
                _
              $region71: #{maxpool2d_ceil.1} parent=39 // pred_check_branch
                %1203 = sbr.rel (%p1090) target = $region73
              $region72: #{maxpool2d_ceil.1} parent=39 // pred_region
                %s1204 = sand.u32 %s1066, 7
                %s1205 = ssub.s32 %s1066, %s1204
                %s1206 = scalar_lea.vmem %s1053, %s1205 [#allocation2]
                %s1207 = ssub.s32 %s1066, %s1204
                %s1208 = scalar_lea.vmem %s1065, %s1207
                %s1209 = sshrl.u32 %s1066, 3
                %s1210 = sshrl.u32 %s1209, 5
                // While loop
                $region74: #{maxpool2d_ceil.1} parent=72 // loop_pre_header
                  _
                $region75: #{maxpool2d_ceil.1} parent=72 // loop_header
                  %s1212 = sphi 0, %s1214
                  %p1213 = scmp.ge.s32.totalorder %s1212, %s1210
                  %s1217 = sphi 0, %s1286
                  %s1218 = sphi %s1053, %s1289
                  %s1219 = sphi %s1065, %s1290
                $region76: #{maxpool2d_ceil.1} parent=72 // loop_header_branch
                  %1216 = sbr.rel (%p1213) target = $region80
                $region77: #{maxpool2d_ceil.1} parent=72 // loop_body
                  %v1220 = vld [vmem:[%s1218] sm:$0xff]
                  %1221 = vst [vmem:[%s1219] sm:$0xff] %v1220
                  %v1222 = vld [vmem:[%s1218 + $0x8] sm:$0xff]
                  %1223 = vst [vmem:[%s1219 + $0x8] sm:$0xff] %v1222
                  %v1224 = vld [vmem:[%s1218 + $0x10] sm:$0xff]
                  %1225 = vst [vmem:[%s1219 + $0x10] sm:$0xff] %v1224
                  %v1226 = vld [vmem:[%s1218 + $0x18] sm:$0xff]
                  %1227 = vst [vmem:[%s1219 + $0x18] sm:$0xff] %v1226
                  %v1228 = vld [vmem:[%s1218 + $0x20] sm:$0xff]
                  %1229 = vst [vmem:[%s1219 + $0x20] sm:$0xff] %v1228
                  %v1230 = vld [vmem:[%s1218 + $0x28] sm:$0xff]
                  %1231 = vst [vmem:[%s1219 + $0x28] sm:$0xff] %v1230
                  %v1232 = vld [vmem:[%s1218 + $0x30] sm:$0xff]
                  %1233 = vst [vmem:[%s1219 + $0x30] sm:$0xff] %v1232
                  %v1234 = vld [vmem:[%s1218 + $0x38] sm:$0xff]
                  %1235 = vst [vmem:[%s1219 + $0x38] sm:$0xff] %v1234
                  %v1236 = vld [vmem:[%s1218 + $0x40] sm:$0xff]
                  %1237 = vst [vmem:[%s1219 + $0x40] sm:$0xff] %v1236
                  %v1238 = vld [vmem:[%s1218 + $0x48] sm:$0xff]
                  %1239 = vst [vmem:[%s1219 + $0x48] sm:$0xff] %v1238
                  %v1240 = vld [vmem:[%s1218 + $0x50] sm:$0xff]
                  %1241 = vst [vmem:[%s1219 + $0x50] sm:$0xff] %v1240
                  %v1242 = vld [vmem:[%s1218 + $0x58] sm:$0xff]
                  %1243 = vst [vmem:[%s1219 + $0x58] sm:$0xff] %v1242
                  %v1244 = vld [vmem:[%s1218 + $0x60] sm:$0xff]
                  %1245 = vst [vmem:[%s1219 + $0x60] sm:$0xff] %v1244
                  %v1246 = vld [vmem:[%s1218 + $0x68] sm:$0xff]
                  %1247 = vst [vmem:[%s1219 + $0x68] sm:$0xff] %v1246
                  %v1248 = vld [vmem:[%s1218 + $0x70] sm:$0xff]
                  %1249 = vst [vmem:[%s1219 + $0x70] sm:$0xff] %v1248
                  %v1250 = vld [vmem:[%s1218 + $0x78] sm:$0xff]
                  %1251 = vst [vmem:[%s1219 + $0x78] sm:$0xff] %v1250
                  %v1252 = vld [vmem:[%s1218 + $0x80] sm:$0xff]
                  %1253 = vst [vmem:[%s1219 + $0x80] sm:$0xff] %v1252
                  %v1254 = vld [vmem:[%s1218 + $0x88] sm:$0xff]
                  %1255 = vst [vmem:[%s1219 + $0x88] sm:$0xff] %v1254
                  %v1256 = vld [vmem:[%s1218 + $0x90] sm:$0xff]
                  %1257 = vst [vmem:[%s1219 + $0x90] sm:$0xff] %v1256
                  %v1258 = vld [vmem:[%s1218 + $0x98] sm:$0xff]
                  %1259 = vst [vmem:[%s1219 + $0x98] sm:$0xff] %v1258
                  %v1260 = vld [vmem:[%s1218 + $0xa0] sm:$0xff]
                  %1261 = vst [vmem:[%s1219 + $0xa0] sm:$0xff] %v1260
                  %v1262 = vld [vmem:[%s1218 + $0xa8] sm:$0xff]
                  %1263 = vst [vmem:[%s1219 + $0xa8] sm:$0xff] %v1262
                  %v1264 = vld [vmem:[%s1218 + $0xb0] sm:$0xff]
                  %1265 = vst [vmem:[%s1219 + $0xb0] sm:$0xff] %v1264
                  %v1266 = vld [vmem:[%s1218 + $0xb8] sm:$0xff]
                  %1267 = vst [vmem:[%s1219 + $0xb8] sm:$0xff] %v1266
                  %v1268 = vld [vmem:[%s1218 + $0xc0] sm:$0xff]
                  %1269 = vst [vmem:[%s1219 + $0xc0] sm:$0xff] %v1268
                  %v1270 = vld [vmem:[%s1218 + $0xc8] sm:$0xff]
                  %1271 = vst [vmem:[%s1219 + $0xc8] sm:$0xff] %v1270
                  %v1272 = vld [vmem:[%s1218 + $0xd0] sm:$0xff]
                  %1273 = vst [vmem:[%s1219 + $0xd0] sm:$0xff] %v1272
                  %v1274 = vld [vmem:[%s1218 + $0xd8] sm:$0xff]
                  %1275 = vst [vmem:[%s1219 + $0xd8] sm:$0xff] %v1274
                  %v1276 = vld [vmem:[%s1218 + $0xe0] sm:$0xff]
                  %1277 = vst [vmem:[%s1219 + $0xe0] sm:$0xff] %v1276
                  %v1278 = vld [vmem:[%s1218 + $0xe8] sm:$0xff]
                  %1279 = vst [vmem:[%s1219 + $0xe8] sm:$0xff] %v1278
                  %v1280 = vld [vmem:[%s1218 + $0xf0] sm:$0xff]
                  %1281 = vst [vmem:[%s1219 + $0xf0] sm:$0xff] %v1280
                  %v1282 = vld [vmem:[%s1218 + $0xf8] sm:$0xff]
                  %1283 = vst [vmem:[%s1219 + $0xf8] sm:$0xff] %v1282
                  %s1284 = sadd.s32 1, %s1217
                  %p1285 = scmp.ge.s32.totalorder %s1284, %s1210
                  %s1286 = scalar_select %p1285, 0, %s1284
                  %s1287 = smul.u32 %s1286, 256
                  %s1288 = smul.u32 %s1286, 256
                  %s1289 = scalar_lea.vmem %s1053, %s1287 [#allocation2]
                  %s1290 = scalar_lea.vmem %s1065, %s1288
                $region78: #{maxpool2d_ceil.1} parent=72 // loop_footer
                  %s1214 = sadd.s32 %s1212, 1
                $region79: #{maxpool2d_ceil.1} parent=72 // loop_footer_branch
                  %1211 = sbr.rel target = $region75
                $region80: #{maxpool2d_ceil.1} parent=72 // loop_exit
                  _
                %s1291 = sshrl.u32 %s1209, 5
                %s1292 = sand.u32 %s1209, 31
                %s1293 = smul.u32 %s1291, 32
                %s1294 = smul.u32 8, %s1293
                %s1295 = scalar_lea.vmem %s1053, %s1294 [#allocation2]
                %s1296 = smul.u32 8, %s1293
                %s1297 = scalar_lea.vmem %s1065, %s1296
                // While loop
                $region81: #{maxpool2d_ceil.1} parent=72 // loop_pre_header
                  _
                $region82: #{maxpool2d_ceil.1} parent=72 // loop_header
                  %s1299 = sphi 0, %s1301
                  %p1300 = scmp.ge.s32.totalorder %s1299, %s1292
                  %s1304 = sphi 0, %s1311
                  %s1305 = sphi %s1295, %s1314
                  %s1306 = sphi %s1297, %s1315
                $region83: #{maxpool2d_ceil.1} parent=72 // loop_header_branch
                  %1303 = sbr.rel (%p1300) target = $region87
                $region84: #{maxpool2d_ceil.1} parent=72 // loop_body
                  %v1307 = vld [vmem:[%s1305] sm:$0xff]
                  %1308 = vst [vmem:[%s1306] sm:$0xff] %v1307
                  %s1309 = sadd.s32 1, %s1304
                  %p1310 = scmp.ge.s32.totalorder %s1309, %s1292
                  %s1311 = scalar_select %p1310, 0, %s1309
                  %s1312 = smul.u32 %s1311, 8
                  %s1313 = smul.u32 %s1311, 8
                  %s1314 = scalar_lea.vmem %s1295, %s1312 [#allocation2]
                  %s1315 = scalar_lea.vmem %s1297, %s1313
                $region85: #{maxpool2d_ceil.1} parent=72 // loop_footer
                  %s1301 = sadd.s32 %s1299, 1
                $region86: #{maxpool2d_ceil.1} parent=72 // loop_footer_branch
                  %1298 = sbr.rel target = $region82
                $region87: #{maxpool2d_ceil.1} parent=72 // loop_exit
                  _
                %s1316 = sshll.u32 1, %s1204
                %s1317 = ssub.s32 %s1316, 1
                loop: start=0, step=1, limit=1
                $region88: #{maxpool2d_ceil.1} parent=72 // loop_pre_header
                  _
                $region89: #{maxpool2d_ceil.1} parent=72 // loop_header
                  %s1319 = sphi 0, %s1323
                  %p1320 = scmp.ge.s32.totalorder %s1319, 1
                  %s1324 = sphi %s1206, %s1206
                  %s1325 = sphi %s1208, %s1208
                $region90: #{maxpool2d_ceil.1} parent=72 // loop_header_branch
                  %1322 = sbr.rel (%p1320) target = $region94
                $region91: #{maxpool2d_ceil.1} parent=72 // loop_body
                  %v1326 = vld [vmem:[%s1324] sm:%s1317]
                  %1327 = vst [vmem:[%s1325] sm:%s1317] %v1326
                $region92: #{maxpool2d_ceil.1} parent=72 // loop_footer
                  %s1323 = sadd.s32 1, %s1319
                $region93: #{maxpool2d_ceil.1} parent=72 // loop_footer_branch
                  %1318 = sbr.rel target = $region89
                $region94: #{maxpool2d_ceil.1} parent=72 // loop_exit
                  _
              $region73: #{maxpool2d_ceil.1} parent=39 // pred_fallthru
                _
            $region40: #{maxpool2d_ceil.1} parent=35 // pred_fallthru
              _
            // Predicated region
            $region41: #{maxpool2d_ceil.1} parent=35 // pred_check
              %p1074 = pneg %p1070
            $region42: #{maxpool2d_ceil.1} parent=35 // pred_check_branch
              %1076 = sbr.rel (%p1074) target = $region44
            $region43: #{maxpool2d_ceil.1} parent=35 // pred_region
              %s1077 = sshll.u32 1, %s1066
              %s1078 = ssub.s32 %s1077, 1
              loop: start=0, step=1, limit=1
              $region45: #{maxpool2d_ceil.1} parent=43 // loop_pre_header
                _
              $region46: #{maxpool2d_ceil.1} parent=43 // loop_header
                %s1080 = sphi 0, %s1084
                %p1081 = scmp.ge.s32.totalorder %s1080, 1
                %s1085 = sphi %s1053, %s1053
                %s1086 = sphi %s1065, %s1065
              $region47: #{maxpool2d_ceil.1} parent=43 // loop_header_branch
                %1083 = sbr.rel (%p1081) target = $region51
              $region48: #{maxpool2d_ceil.1} parent=43 // loop_body
                %v1087 = vld [vmem:[%s1085] sm:%s1078]
                %1088 = vst [vmem:[%s1086] sm:%s1078] %v1087
              $region49: #{maxpool2d_ceil.1} parent=43 // loop_footer
                %s1084 = sadd.s32 1, %s1080
              $region50: #{maxpool2d_ceil.1} parent=43 // loop_footer_branch
                %1079 = sbr.rel target = $region46
              $region51: #{maxpool2d_ceil.1} parent=43 // loop_exit
                _
            $region44: #{maxpool2d_ceil.1} parent=35 // pred_fallthru
              _
          $region36: #{maxpool2d_ceil.1} parent=31 // pred_fallthru
            _
          %1328 = vnop
        $region32: #{maxpool2d_ceil.1} parent=27 // pred_fallthru
          _
      $region28: #{maxpool2d_ceil.1} parent=5 // pred_fallthru
        _
      %p1329 = scmp.le.s32.totalorder 2, %s8
      // Predicated region
      $region95: #{maxpool2d_ceil.1} parent=5 // pred_check
        %p1330 = pneg %p1329
      $region96: #{maxpool2d_ceil.1} parent=5 // pred_check_branch
        %1332 = sbr.rel (%p1330) target = $region98
      $region97: #{maxpool2d_ceil.1} parent=5 // pred_region
        %s1333 = ssub.s32 %s8, 2
        // Predicated region
        $region99: #{maxpool2d_ceil.1} parent=97 // pred_check
          %p1334 = pneg %p105
        $region100: #{maxpool2d_ceil.1} parent=97 // pred_check_branch
          %1336 = sbr.rel (%p1334) target = $region102
        $region101: #{maxpool2d_ceil.1} parent=97 // pred_region
          %s1337 = sand.u32 %s90, 1
          %s1338 = sand.u32 %s90, 1
          %s1339 = smul.addr %s1338, 30
          %s1340 = scalar_lea.vmem [#allocation2], %s1339
        $region102: #{maxpool2d_ceil.1} parent=97 // pred_fallthru
          _
      $region98: #{maxpool2d_ceil.1} parent=5 // pred_fallthru
        _
    $region6: #{maxpool2d_ceil.1} parent=1 // loop_footer
      %s12 = sadd.s32 1, %s8
    $region7: #{maxpool2d_ceil.1} parent=1 // loop_footer_branch
      %7 = sbr.rel target = $region3
    $region8: #{maxpool2d_ceil.1} parent=1 // loop_exit
      _

</llo_original>
